<compile_context>
chip_gen: v7x
topology: tpu7x:2x2x1
jax: 0.10.0
libtpu: 0.0.40
codegen_flags: <defaults>
</compile_context>

<pallas_src>
import math
import functools

import jax
import jax.numpy as jnp
from jax.experimental import pallas as pl
from jax.experimental.pallas import tpu as pltpu

# ----------------------------- static config --------------------------------
PAD_TOKEN_ID = 1
LABEL_IDS = (50, 51, 52)                         # synthetic class-token ids
MAPPING = (0, 2) + tuple(sorted(LABEL_IDS))      # == torch `mapping` buffer
SRC_START_INDEX = len(MAPPING)                   # 5
LABEL_START_ID = LABEL_IDS[0]
LABEL_END_ID = LABEL_IDS[-1] + 1
N_TAG = LABEL_END_ID - LABEL_START_ID            # 3

VOCAB = 64
MAX_POS = 128
HIDDEN = 32
FFN = 64

H, F = HIDDEN, FFN
MXU_DTYPE = jnp.bfloat16   # MXU-native on v5e/v6e/v7x; accumulation stays f32.

# ---- packed-weight layout: one 128-lane-aligned slot per projection --------
# (at real H=1024 the slots are exactly weight-width; at toy H=32 they are
#  zero-padded, but all in-kernel slice starts land on 128-lane boundaries)
SLOT = 128
OFF_SA_Q, OFF_SA_K, OFF_SA_V = 0 * SLOT, 1 * SLOT, 2 * SLOT
OFF_SA_O = 3 * SLOT
OFF_CA_Q = 4 * SLOT
OFF_CA_K, OFF_CA_V = 5 * SLOT, 6 * SLOT
OFF_CA_O = 7 * SLOT
OFF_FFN1 = 8 * SLOT            # width F
OFF_MLP1 = 9 * SLOT
OFF_MLP2 = 10 * SLOT
OFF_ET = 11 * SLOT             # width CPAD (weights blob only)
OFF_FFN2B = 11 * SLOT          # width H   (bias blob only)
B_COLS = 12 * SLOT


# ------------------------------ small helpers -------------------------------
def _layer_norm(x, g, b, eps=1e-5):
    mu = jnp.mean(x, axis=-1, keepdims=True)
    var = jnp.mean(jnp.square(x - mu), axis=-1, keepdims=True)
    return (x - mu) * jax.lax.rsqrt(var + eps) * g + b


def _mm_nn(a, b):
    """(M,K) @ (K,N) on the MXU: bf16 operands, f32 accumulation."""
    return jax.lax.dot_general(a.astype(MXU_DTYPE), b.astype(MXU_DTYPE),
                               (((1,), (0,)), ((), ())),
                               preferred_element_type=jnp.float32)


def _mm_nt(a, b):
    """(M,K) @ (N,K)^T on the MXU (activation-activation dots)."""
    return jax.lax.dot_general(a.astype(MXU_DTYPE), b.astype(MXU_DTYPE),
                               (((1,), (1,)), ((), ())),
                               preferred_element_type=jnp.float32)


def _softmax_rows(s):
    # f32 exp on the EUP + approximate EUP reciprocal (frees the VALU divide).
    # TODO(synk): revisit approx reciprocal (~2^-12 rel err) if the head feeds
    # an argmax-sensitive loss at full scale.
    m = jnp.max(s, axis=-1, keepdims=True)
    e = jnp.exp(s - m)
    return e * pl.reciprocal(jnp.sum(e, axis=-1, keepdims=True), approx=True)


# --------------------------- fused Pallas kernel -----------------------------
def _fbart_batch_kernel(x_ref, enc_ref, mask_ref, wh_ref, w2_ref, bb_ref,
                        ln_ref, out_ref, *, L, N, CPAD):
    # Per grid step (one batch element):
    #   x_ref   : (L, H)   decoder token+pos embeddings (f32)
    #   enc_ref : (N, H)   encoder outputs (f32)
    #   mask_ref: (2, N)   row0 = cross-attn additive pad bias (0 / -1e9)
    #                      row1 = word-score mask indicator (1.0 = masked)
    #   wh_ref  : (H, 11*SLOT + CPAD) packed pre-transposed weights (bf16)
    #   w2_ref  : (F, H)   FFN down projection (bf16)
    #   bb_ref  : (1, B_COLS) packed biases (f32), same slot offsets
    #   ln_ref  : (8, H)   rows 0-3 LN gains, rows 4-7 LN biases (f32)
    #   out_ref : (L, CPAD) lane-dense padded logits (f32)
    C = SRC_START_INDEX + N
    scale = 1.0 / math.sqrt(H)
    ln = ln_ref[...]
    x = x_ref[...]
    enc = enc_ref[...]

    # layernorm_embedding
    x1 = _layer_norm(x, ln[0:1], ln[4:5])

    # ---- causal self-attention (fused QKV; splits at 128-lane slots) ----
    qkv = _mm_nn(x1, wh_ref[:, OFF_SA_Q:OFF_SA_Q + 3 * SLOT]) \
        + bb_ref[:, OFF_SA_Q:OFF_SA_Q + 3 * SLOT]
    q = qkv[:, 0:H]
    k = qkv[:, SLOT:SLOT + H]
    v = qkv[:, 2 * SLOT:2 * SLOT + H]
    s = _mm_nt(q * scale, k)                                    # (L, L)
    row = jax.lax.broadcasted_iota(jnp.int32, (L, L), 0)
    col = jax.lax.broadcasted_iota(jnp.int32, (L, L), 1)
    s = jnp.where(col > row, -1e9, s)                           # in-kernel causal mask
    p = _softmax_rows(s)
    o = _mm_nn(_mm_nn(p, v), wh_ref[:, OFF_SA_O:OFF_SA_O + H]) \
        + bb_ref[:, OFF_SA_O:OFF_SA_O + H]
    x2 = _layer_norm(x1 + o, ln[1:2], ln[5:6])

    # ---- cross-attention (encoder pad bias from compact (1, N) row) ----
    q = _mm_nn(x2, wh_ref[:, OFF_CA_Q:OFF_CA_Q + H]) \
        + bb_ref[:, OFF_CA_Q:OFF_CA_Q + H]
    kv = _mm_nn(enc, wh_ref[:, OFF_CA_K:OFF_CA_K + 2 * SLOT]) \
        + bb_ref[:, OFF_CA_K:OFF_CA_K + 2 * SLOT]
    k = kv[:, 0:H]
    v = kv[:, SLOT:SLOT + H]
    s = _mm_nt(q * scale, k) + mask_ref[0:1, :]                 # (L, N)
    p = _softmax_rows(s)
    o = _mm_nn(_mm_nn(p, v), wh_ref[:, OFF_CA_O:OFF_CA_O + H]) \
        + bb_ref[:, OFF_CA_O:OFF_CA_O + H]
    x3 = _layer_norm(x2 + o, ln[2:3], ln[6:7])

    # ---- feed-forward ----
    hmid = jnp.maximum(_mm_nn(x3, wh_ref[:, OFF_FFN1:OFF_FFN1 + F])
                       + bb_ref[:, OFF_FFN1:OFF_FFN1 + F], 0.0)
    hout = _mm_nn(hmid, w2_ref[...]) + bb_ref[:, OFF_FFN2B:OFF_FFN2B + H]
    hid = _layer_norm(x3 + hout, ln[3:4], ln[7:8])              # last_hidden_state

    # ---- scoring head: encoder MLP, eos/tag scores, word scores ----
    m = jnp.maximum(_mm_nn(enc, wh_ref[:, OFF_MLP1:OFF_MLP1 + H])
                    + bb_ref[:, OFF_MLP1:OFF_MLP1 + H], 0.0)
    src_out = _mm_nn(m, wh_ref[:, OFF_MLP2:OFF_MLP2 + H]) \
        + bb_ref[:, OFF_MLP2:OFF_MLP2 + H]                      # (N, H)
    # eos|tag scores land directly on output lanes 1..4 (pre-placed weight)
    et_full = _mm_nn(hid, wh_ref[:, OFF_ET:OFF_ET + CPAD])      # (L, CPAD)
    word = _mm_nt(hid, src_out)                                 # (L, N)

    # ---- logits assembly: register-side, ONE full lane-dense store ----
    # one-hot placement of the N source columns to output lanes [5, 5+N)
    prow = jax.lax.broadcasted_iota(jnp.int32, (N, CPAD), 0)
    pcol = jax.lax.broadcasted_iota(jnp.int32, (N, CPAD), 1)
    place = (pcol == prow + SRC_START_INDEX).astype(jnp.float32)
    word_full = _mm_nn(word, place)                             # (L, CPAD)
    wmask_full = _mm_nn(mask_ref[1:2, :], place)                # (1, CPAD), 0/1 exact

    ocol = jax.lax.broadcasted_iota(jnp.int32, (L, CPAD), 1)
    core = jnp.where(wmask_full > 0.5, -1e32, et_full + word_full)   # exact -1e32
    out_ref[...] = jnp.where((ocol >= 1) & (ocol < C), core, -1e24)  # single store


# --------------------------- weight packing (wrapper) ------------------------
def _pack_weights(p, cpad):
    wcols = 11 * SLOT + cpad
    wh = jnp.zeros((H, wcols), jnp.float32)
    wh = wh.at[:, OFF_SA_Q:OFF_SA_Q + H].set(p['sa_w'][0].T)
    wh = wh.at[:, OFF_SA_K:OFF_SA_K + H].set(p['sa_w'][1].T)
    wh = wh.at[:, OFF_SA_V:OFF_SA_V + H].set(p['sa_w'][2].T)
    wh = wh.at[:, OFF_SA_O:OFF_SA_O + H].set(p['sa_w'][3].T)
    wh = wh.at[:, OFF_CA_Q:OFF_CA_Q + H].set(p['ca_w'][0].T)
    wh = wh.at[:, OFF_CA_K:OFF_CA_K + H].set(p['ca_w'][1].T)
    wh = wh.at[:, OFF_CA_V:OFF_CA_V + H].set(p['ca_w'][2].T)
    wh = wh.at[:, OFF_CA_O:OFF_CA_O + H].set(p['ca_w'][3].T)
    wh = wh.at[:, OFF_FFN1:OFF_FFN1 + F].set(p['ffn_w1'].T)
    wh = wh.at[:, OFF_MLP1:OFF_MLP1 + H].set(p['mlp_w1'].T)
    wh = wh.at[:, OFF_MLP2:OFF_MLP2 + H].set(p['mlp_w2'].T)
    # eos | tag rows pre-placed at output lanes [1, SRC_START_INDEX)
    et = jnp.concatenate([p['embed_tokens'][2:3],
                          p['embed_tokens'][LABEL_START_ID:LABEL_END_ID]], 0).T
    wh = wh.at[:, OFF_ET + 1:OFF_ET + 1 + 1 + N_TAG].set(et)

    bb = jnp.zeros((1, B_COLS), jnp.float32)
    bb = bb.at[:, OFF_SA_Q:OFF_SA_Q + H].set(p['sa_b'][0][None])
    bb = bb.at[:, OFF_SA_K:OFF_SA_K + H].set(p['sa_b'][1][None])
    bb = bb.at[:, OFF_SA_V:OFF_SA_V + H].set(p['sa_b'][2][None])
    bb = bb.at[:, OFF_SA_O:OFF_SA_O + H].set(p['sa_b'][3][None])
    bb = bb.at[:, OFF_CA_Q:OFF_CA_Q + H].set(p['ca_b'][0][None])
    bb = bb.at[:, OFF_CA_K:OFF_CA_K + H].set(p['ca_b'][1][None])
    bb = bb.at[:, OFF_CA_V:OFF_CA_V + H].set(p['ca_b'][2][None])
    bb = bb.at[:, OFF_CA_O:OFF_CA_O + H].set(p['ca_b'][3][None])
    bb = bb.at[:, OFF_FFN1:OFF_FFN1 + F].set(p['ffn_b1'])
    bb = bb.at[:, OFF_FFN2B:OFF_FFN2B + H].set(p['ffn_b2'])
    bb = bb.at[:, OFF_MLP1:OFF_MLP1 + H].set(p['mlp_b1'])
    bb = bb.at[:, OFF_MLP2:OFF_MLP2 + H].set(p['mlp_b2'])

    ln_pack = jnp.concatenate([p['ln_g'], p['ln_b']], axis=0)   # (8, H)
    return (wh.astype(MXU_DTYPE), bb, ln_pack.astype(jnp.float32),
            p['ffn_w2'].T.astype(MXU_DTYPE))


# ------------------------- plain-JAX reference path -------------------------
def _decoder_layer_ref(x, enc, enc_mask, p):
    Hd = x.shape[-1]
    L = x.shape[1]
    scale = 1.0 / math.sqrt(Hd)

    def lin(t, w, b):
        return jnp.einsum('...ih,oh->...io', t, w) + b

    x = _layer_norm(x, p['ln_g'][0], p['ln_b'][0])
    q = lin(x, p['sa_w'][0], p['sa_b'][0])
    k = lin(x, p['sa_w'][1], p['sa_b'][1])
    v = lin(x, p['sa_w'][2], p['sa_b'][2])
    s = jnp.einsum('blh,bmh->blm', q * scale, k)
    causal = jnp.triu(jnp.ones((L, L), bool), 1)
    s = jnp.where(causal[None], -1e9, s)
    o = jnp.einsum('blm,bmh->blh', jax.nn.softmax(s, -1), v)
    o = lin(o, p['sa_w'][3], p['sa_b'][3])
    x = _layer_norm(x + o, p['ln_g'][1], p['ln_b'][1])

    q = lin(x, p['ca_w'][0], p['ca_b'][0])
    k = lin(enc, p['ca_w'][1], p['ca_b'][1])
    v = lin(enc, p['ca_w'][2], p['ca_b'][2])
    s = jnp.einsum('blh,bnh->bln', q * scale, k)
    s = jnp.where((enc_mask == 0)[:, None, :], -1e9, s)
    o = jnp.einsum('bln,bnh->blh', jax.nn.softmax(s, -1), v)
    o = lin(o, p['ca_w'][3], p['ca_b'][3])
    x = _layer_norm(x + o, p['ln_g'][2], p['ln_b'][2])

    h = jax.nn.relu(jnp.einsum('blh,fh->blf', x, p['ffn_w1']) + p['ffn_b1'])
    h = jnp.einsum('blf,hf->blh', h, p['ffn_w2']) + p['ffn_b2']
    return _layer_norm(x + h, p['ln_g'][3], p['ln_b'][3])


def _head_ref(hid, enc, wordmask, p, eos_w, tag_w, N):
    h = jax.nn.relu(jnp.einsum('bnh,oh->bno', enc, p['mlp_w1']) + p['mlp_b1'])
    src_out = jnp.einsum('bnh,oh->bno', h, p['mlp_w2']) + p['mlp_b2']
    eos = jnp.einsum('blh,oh->blo', hid, eos_w)
    tag = jnp.einsum('blh,oh->blo', hid, tag_w)
    word = jnp.einsum('blh,bnh->bln', hid, src_out)
    word = jnp.where(wordmask[:, None, :] != 0, -1e32, word)
    B, L = hid.shape[:2]
    logits = jnp.full((B, L, SRC_START_INDEX + N), -1e24, jnp.float32)
    logits = logits.at[:, :, 1:2].set(eos)
    logits = logits.at[:, :, 2:SRC_START_INDEX].set(tag)
    logits = logits.at[:, :, SRC_START_INDEX:].set(word)
    return logits


# --------------------------------- forward ----------------------------------
def fbart_decoder_forward(params, tokens, encoder_output, encoder_mask,
                          src_tokens, use_pallas=True):
    tokens = tokens.astype(jnp.int32)
    src_tokens = src_tokens.astype(jnp.int32)
    encoder_mask = encoder_mask.astype(jnp.int32)
    encoder_output = encoder_output.astype(jnp.float32)

    B, L = tokens.shape
    N = src_tokens.shape[1]
    C = SRC_START_INDEX + N
    mapping = jnp.asarray(MAPPING, jnp.int32)

    # ----- pointer-token remapping (integer glue, plain JAX) -----
    eq1 = (tokens == 1).astype(jnp.int32)
    cumsum = jnp.cumsum(jnp.flip(eq1, axis=1), axis=-1)
    tgt_pad_mask = jnp.flip(cumsum, axis=1) != cumsum[:, -1:]
    mapping_token_mask = tokens < SRC_START_INDEX
    mapped_tokens = jnp.where(tokens >= SRC_START_INDEX, 0, tokens)
    tag_mapped_tokens = mapping[mapped_tokens]
    src_tokens_index = tokens - SRC_START_INDEX
    src_tokens_index = jnp.where(src_tokens_index < 0, 0, src_tokens_index)
    word_mapped_tokens = jnp.take_along_axis(src_tokens, src_tokens_index, axis=1)
    dec_tokens = jnp.where(mapping_token_mask, tag_mapped_tokens, word_mapped_tokens)
    dec_tokens = jnp.where(tgt_pad_mask, PAD_TOKEN_ID, dec_tokens)
    # eval path (module.training == False): no truncation, attention_mask=None.

    # ----- token + positional embedding (gather glue) -----
    x = (params['embed_tokens'][dec_tokens]
         + params['embed_positions'][jnp.arange(L) + 2][None])      # (B, L, H)

    # word-score mask: encoder pad OR at/after first eos (id 2) in src
    word_masked = ((encoder_mask == 0) |
                   (jnp.cumsum((src_tokens == 2).astype(jnp.int32), axis=1) >= 1))

    if not use_pallas:
        eos_w = params['embed_tokens'][2:3]
        tag_w = params['embed_tokens'][LABEL_START_ID:LABEL_END_ID]
        hidden = _decoder_layer_ref(x, encoder_output, encoder_mask, params)
        return _head_ref(hidden, encoder_output, word_masked.astype(jnp.int32),
                         params, eos_w, tag_w, N)

    CPAD = ((C + 127) // 128) * 128        # lane-dense padded logits width

    # compact per-batch masks (replaces the old (2, B*L, B*N) bias tensor):
    #   row 0: cross-attn additive pad bias, row 1: word-score mask indicator
    ca_bias = jnp.where(encoder_mask != 0, 0.0, -1e9).astype(jnp.float32)
    maskpack = jnp.stack([ca_bias, word_masked.astype(jnp.float32)], axis=1)  # (B,2,N)

    wh, bb, ln_pack, ffn_w2t = _pack_weights(params, CPAD)
    wcols = wh.shape[1]

    kernel = functools.partial(_fbart_batch_kernel, L=L, N=N, CPAD=CPAD)
    out = pl.pallas_call(
        kernel,
        out_shape=jax.ShapeDtypeStruct((B, L, CPAD), jnp.float32),
        grid=(B,),
        in_specs=[
            pl.BlockSpec((None, L, HIDDEN), lambda b: (b, 0, 0)),     # x
            pl.BlockSpec((None, N, HIDDEN), lambda b: (b, 0, 0)),     # enc outputs
            pl.BlockSpec((None, 2, N), lambda b: (b, 0, 0)),          # compact masks
            pl.BlockSpec((HIDDEN, wcols), lambda b: (0, 0)),          # weight blob
            pl.BlockSpec((FFN, HIDDEN), lambda b: (0, 0)),            # FFN down proj
            pl.BlockSpec((1, B_COLS), lambda b: (0, 0)),              # bias blob
            pl.BlockSpec((8, HIDDEN), lambda b: (0, 0)),              # LN blob
        ],
        out_specs=pl.BlockSpec((None, L, CPAD), lambda b: (b, 0, 0)),
        compiler_params=pltpu.CompilerParams(
            dimension_semantics=("parallel",),        # v7x: 2 TCs split the batch
            vmem_limit_bytes=32 * 1024 * 1024),
    )(x, encoder_output, maskpack, wh, ffn_w2t, bb, ln_pack)

    return out[:, :, :C]


# ------------------------------ parameter init -------------------------------
def init_params(key):
    ks = jax.random.split(key, 14)

    def nrm(k, shape, s=0.02):
        return s * jax.random.normal(k, shape, jnp.float32)

    return dict(
        embed_tokens=nrm(ks[0], (VOCAB, HIDDEN), 1.0),
        embed_positions=nrm(ks[1], (MAX_POS, HIDDEN), 0.02),
        sa_w=nrm(ks[2], (4, HIDDEN, HIDDEN)),        # q,k,v,out projections
        sa_b=nrm(ks[3], (4, HIDDEN)),
        ca_w=nrm(ks[4], (4, HIDDEN, HIDDEN)),
        ca_b=nrm(ks[5], (4, HIDDEN)),
        ffn_w1=nrm(ks[6], (FFN, HIDDEN)),
        ffn_b1=nrm(ks[7], (1, FFN)),
        ffn_w2=nrm(ks[8], (HIDDEN, FFN)),
        ffn_b2=nrm(ks[9], (1, HIDDEN)),
        ln_g=jnp.ones((4, HIDDEN), jnp.float32),     # emb, self, cross, final LN
        ln_b=jnp.zeros((4, HIDDEN), jnp.float32),
        mlp_w1=nrm(ks[10], (HIDDEN, HIDDEN)),        # encoder_mlp
        mlp_b1=nrm(ks[11], (1, HIDDEN)),
        mlp_w2=nrm(ks[12], (HIDDEN, HIDDEN)),
        mlp_b2=nrm(ks[13], (1, HIDDEN)),
    )


# ----------------------------------- main ------------------------------------
if __name__ == "__main__":
    key = jax.random.PRNGKey(0)
    kp, kt, ke, ks = jax.random.split(key, 4)
    params = init_params(kp)

    B, L, N = 2, 8, 16
    tokens = jax.random.randint(kt, (B, L), 0, SRC_START_INDEX + N, dtype=jnp.int32)
    tokens = tokens.at[:, 0].set(0)          # bos pointer
    tokens = tokens.at[0, L - 2].set(1)      # eos pointer -> later positions padded
    encoder_output = jax.random.normal(ke, (B, N, HIDDEN), jnp.float32)
    valid_len = jnp.array([N, N - 4])
    encoder_mask = (jnp.arange(N)[None, :] < valid_len[:, None]).astype(jnp.int32)
    src_tokens = jax.random.randint(ks, (B, N), 3, VOCAB, dtype=jnp.int32)
    src_tokens = src_tokens.at[1, N - 5].set(2)   # eos token inside source seq 1

    run_pallas = jax.jit(functools.partial(fbart_decoder_forward, use_pallas=True))
    run_ref = jax.jit(functools.partial(fbart_decoder_forward, use_pallas=False))

    out = jax.block_until_ready(
        run_pallas(params, tokens, encoder_output, encoder_mask, src_tokens))
    ref = jax.block_until_ready(
        run_ref(params, tokens, encoder_output, encoder_mask, src_tokens))

    assert out.shape == (B, L, SRC_START_INDEX + N)
    # Loose tolerance: kernel uses bf16 MXU operands (f32 accumulation) while
    # the reference path is pure f32; eos/tag scores have magnitude ~O(10).
    assert bool(jnp.allclose(out, ref, rtol=5e-2, atol=1e-1))
    print("KERNEL_OK")
</pallas_src>

<mosaic_0001>
module attributes {stable_mosaic.version = 11 : i64} {
  func.func @_fbart_batch_kernel(%arg0: i32, %arg1: memref<1x8x32xf32, #tpu.memory_space<vmem>>, %arg2: memref<1x16x32xf32, #tpu.memory_space<vmem>>, %arg3: memref<1x2x16xf32, #tpu.memory_space<vmem>>, %arg4: memref<32x1536xbf16, #tpu.memory_space<vmem>>, %arg5: memref<64x32xbf16, #tpu.memory_space<vmem>>, %arg6: memref<1x1536xf32, #tpu.memory_space<vmem>>, %arg7: memref<8x32xf32, #tpu.memory_space<vmem>>, %arg8: memref<1x8x128xf32, #tpu.memory_space<vmem>>) attributes {dimension_semantics = [#tpu.dimension_semantics<parallel>], iteration_bounds = array<i64: 2>, scalar_prefetch = 0 : i64, scratch_operands = 0 : i64, tpu.core_type = #tpu.core_type<tc>, window_params = [{transform_indices = @transform_0, window_bounds = array<i64: 1, 8, 32>}, {transform_indices = @transform_1, window_bounds = array<i64: 1, 16, 32>}, {transform_indices = @transform_2, window_bounds = array<i64: 1, 2, 16>}, {pipeline_mode = #tpu.pipeline_mode<synchronous>, transform_indices = @transform_3, window_bounds = array<i64: 32, 1536>}, {pipeline_mode = #tpu.pipeline_mode<synchronous>, transform_indices = @transform_4, window_bounds = array<i64: 64, 32>}, {pipeline_mode = #tpu.pipeline_mode<synchronous>, transform_indices = @transform_5, window_bounds = array<i64: 1, 1536>}, {pipeline_mode = #tpu.pipeline_mode<synchronous>, transform_indices = @transform_6, window_bounds = array<i64: 8, 32>}, {transform_indices = @transform_7, window_bounds = array<i64: 1, 8, 128>}]} {
    %c0 = arith.constant 0 : index
    %c0_0 = arith.constant 0 : index
    %0 = vector.load %arg7[%c0, %c0_0] : memref<8x32xf32, #tpu.memory_space<vmem>>, vector<8x32xf32>
    %c0_1 = arith.constant 0 : index
    %c0_2 = arith.constant 0 : index
    %c0_3 = arith.constant 0 : index
    %1 = vector.load %arg1[%c0_1, %c0_2, %c0_3] : memref<1x8x32xf32, #tpu.memory_space<vmem>>, vector<1x8x32xf32>
    %2 = vector.shape_cast %1 : vector<1x8x32xf32> to vector<8x32xf32>
    %c0_4 = arith.constant 0 : index
    %c0_5 = arith.constant 0 : index
    %c0_6 = arith.constant 0 : index
    %3 = vector.load %arg2[%c0_4, %c0_5, %c0_6] : memref<1x16x32xf32, #tpu.memory_space<vmem>>, vector<1x16x32xf32>
    %4 = vector.shape_cast %3 : vector<1x16x32xf32> to vector<16x32xf32>
    %5 = vector.extract_strided_slice %0 {offsets = [0, 0], sizes = [1, 32], strides = [1, 1]} : vector<8x32xf32> to vector<1x32xf32>
    %6 = vector.extract_strided_slice %0 {offsets = [4, 0], sizes = [1, 32], strides = [1, 1]} : vector<8x32xf32> to vector<1x32xf32>
    %cst = arith.constant dense<0.000000e+00> : vector<8xf32>
    %7 = vector.multi_reduction <add>, %2, %cst [1] : vector<8x32xf32> to vector<8xf32>
    %8 = vector.shape_cast %7 : vector<8xf32> to vector<8x1xf32>
    %cst_7 = arith.constant 3.200000e+01 : f32
    %9 = vector.broadcast %cst_7 : f32 to vector<8x1xf32>
    %10 = arith.divf %8, %9 : vector<8x1xf32>
    %11 = vector.broadcast %10 : vector<8x1xf32> to vector<8x32xf32>
    %12 = arith.subf %2, %11 : vector<8x32xf32>
    %13 = arith.mulf %12, %12 : vector<8x32xf32>
    %cst_8 = arith.constant dense<0.000000e+00> : vector<8xf32>
    %14 = vector.multi_reduction <add>, %13, %cst_8 [1] : vector<8x32xf32> to vector<8xf32>
    %15 = vector.shape_cast %14 : vector<8xf32> to vector<8x1xf32>
    %cst_9 = arith.constant 3.200000e+01 : f32
    %16 = vector.broadcast %cst_9 : f32 to vector<8x1xf32>
    %17 = arith.divf %15, %16 : vector<8x1xf32>
    %18 = vector.broadcast %10 : vector<8x1xf32> to vector<8x32xf32>
    %19 = arith.subf %2, %18 : vector<8x32xf32>
    %cst_10 = arith.constant 9.99999974E-6 : f32
    %20 = vector.broadcast %cst_10 : f32 to vector<8x1xf32>
    %21 = arith.addf %17, %20 : vector<8x1xf32>
    %22 = math.rsqrt %21 : vector<8x1xf32>
    %23 = vector.broadcast %22 : vector<8x1xf32> to vector<8x32xf32>
    %24 = arith.mulf %19, %23 : vector<8x32xf32>
    %25 = vector.broadcast %5 : vector<1x32xf32> to vector<8x32xf32>
    %26 = arith.mulf %24, %25 : vector<8x32xf32>
    %27 = vector.broadcast %6 : vector<1x32xf32> to vector<8x32xf32>
    %28 = arith.addf %26, %27 : vector<8x32xf32>
    %c0_11 = arith.constant 0 : index
    %c0_12 = arith.constant 0 : index
    %29 = vector.load %arg4[%c0_11, %c0_12] : memref<32x1536xbf16, #tpu.memory_space<vmem>>, vector<32x384xbf16>
    %30 = arith.truncf %28 : vector<8x32xf32> to vector<8x32xbf16>
    %cst_13 = arith.constant dense<0.000000e+00> : vector<8x384xf32>
    %31 = tpu.matmul %30, %29, %cst_13 {dimension_numbers = #tpu.dot_dimension_numbers<[1], [0], [0], [1], [0, 0, 1, 1], [], []>} : vector<8x32xbf16>, vector<32x384xbf16>, vector<8x384xf32> -> vector<8x384xf32>
    %c0_14 = arith.constant 0 : index
    %c0_15 = arith.constant 0 : index
    %32 = vector.load %arg6[%c0_14, %c0_15] : memref<1x1536xf32, #tpu.memory_space<vmem>>, vector<1x384xf32>
    %33 = vector.broadcast %32 : vector<1x384xf32> to vector<8x384xf32>
    %34 = arith.addf %31, %33 : vector<8x384xf32>
    %35 = vector.extract_strided_slice %34 {offsets = [0, 0], sizes = [8, 32], strides = [1, 1]} : vector<8x384xf32> to vector<8x32xf32>
    %36 = vector.extract_strided_slice %34 {offsets = [0, 128], sizes = [8, 32], strides = [1, 1]} : vector<8x384xf32> to vector<8x32xf32>
    %37 = vector.extract_strided_slice %34 {offsets = [0, 256], sizes = [8, 32], strides = [1, 1]} : vector<8x384xf32> to vector<8x32xf32>
    %cst_16 = arith.constant 0.176776692 : f32
    %38 = vector.broadcast %cst_16 : f32 to vector<8x32xf32>
    %39 = arith.mulf %35, %38 : vector<8x32xf32>
    %40 = arith.truncf %39 : vector<8x32xf32> to vector<8x32xbf16>
    %41 = arith.truncf %36 : vector<8x32xf32> to vector<8x32xbf16>
    %cst_17 = arith.constant dense<0.000000e+00> : vector<8x8xf32>
    %42 = tpu.matmul %40, %41, %cst_17 {dimension_numbers = #tpu.dot_dimension_numbers<[1], [1], [0], [0], [0, 0, 1, 0], [], []>} : vector<8x32xbf16>, vector<8x32xbf16>, vector<8x8xf32> -> vector<8x8xf32>
    %43 = tpu.iota {dimensions = array<i32: 0>} : vector<8x8xi32>
    %44 = tpu.iota {dimensions = array<i32: 1>} : vector<8x8xi32>
    %45 = arith.cmpi sgt, %44, %43 : vector<8x8xi32>
    %cst_18 = arith.constant -1.000000e+09 : f32
    %46 = vector.broadcast %cst_18 : f32 to vector<8x8xf32>
    %47 = arith.select %45, %46, %42 : vector<8x8xi1>, vector<8x8xf32>
    %cst_19 = arith.constant dense<0xFF800000> : vector<8xf32>
    %48 = vector.multi_reduction <maximumf>, %47, %cst_19 [1] : vector<8x8xf32> to vector<8xf32>
    %49 = vector.shape_cast %48 : vector<8xf32> to vector<8x1xf32>
    %50 = vector.broadcast %49 : vector<8x1xf32> to vector<8x8xf32>
    %51 = arith.subf %47, %50 : vector<8x8xf32>
    %52 = math.exp %51 : vector<8x8xf32>
    %cst_20 = arith.constant dense<0.000000e+00> : vector<8xf32>
    %53 = vector.multi_reduction <add>, %52, %cst_20 [1] : vector<8x8xf32> to vector<8xf32>
    %54 = vector.shape_cast %53 : vector<8xf32> to vector<8x1xf32>
    %55 = tpu.reciprocal %54 {approx = true} : vector<8x1xf32> -> vector<8x1xf32>
    %56 = vector.broadcast %55 : vector<8x1xf32> to vector<8x8xf32>
    %57 = arith.mulf %52, %56 : vector<8x8xf32>
    %58 = arith.truncf %57 : vector<8x8xf32> to vector<8x8xbf16>
    %59 = arith.truncf %37 : vector<8x32xf32> to vector<8x32xbf16>
    %cst_21 = arith.constant dense<0.000000e+00> : vector<8x32xf32>
    %60 = tpu.matmul %58, %59, %cst_21 {dimension_numbers = #tpu.dot_dimension_numbers<[1], [0], [0], [1], [0, 0, 1, 1], [], []>} : vector<8x8xbf16>, vector<8x32xbf16>, vector<8x32xf32> -> vector<8x32xf32>
    %c0_22 = arith.constant 0 : index
    %c384 = arith.constant 384 : index
    %61 = vector.load %arg4[%c0_22, %c384] : memref<32x1536xbf16, #tpu.memory_space<vmem>>, vector<32x32xbf16>
    %62 = arith.truncf %60 : vector<8x32xf32> to vector<8x32xbf16>
    %cst_23 = arith.constant dense<0.000000e+00> : vector<8x32xf32>
    %63 = tpu.matmul %62, %61, %cst_23 {dimension_numbers = #tpu.dot_dimension_numbers<[1], [0], [0], [1], [0, 0, 1, 1], [], []>} : vector<8x32xbf16>, vector<32x32xbf16>, vector<8x32xf32> -> vector<8x32xf32>
    %c0_24 = arith.constant 0 : index
    %c384_25 = arith.constant 384 : index
    %64 = vector.load %arg6[%c0_24, %c384_25] : memref<1x1536xf32, #tpu.memory_space<vmem>>, vector<1x32xf32>
    %65 = vector.broadcast %64 : vector<1x32xf32> to vector<8x32xf32>
    %66 = arith.addf %63, %65 : vector<8x32xf32>
    %67 = arith.addf %28, %66 : vector<8x32xf32>
    %68 = vector.extract_strided_slice %0 {offsets = [1, 0], sizes = [1, 32], strides = [1, 1]} : vector<8x32xf32> to vector<1x32xf32>
    %69 = vector.extract_strided_slice %0 {offsets = [5, 0], sizes = [1, 32], strides = [1, 1]} : vector<8x32xf32> to vector<1x32xf32>
    %cst_26 = arith.constant dense<0.000000e+00> : vector<8xf32>
    %70 = vector.multi_reduction <add>, %67, %cst_26 [1] : vector<8x32xf32> to vector<8xf32>
    %71 = vector.shape_cast %70 : vector<8xf32> to vector<8x1xf32>
    %cst_27 = arith.constant 3.200000e+01 : f32
    %72 = vector.broadcast %cst_27 : f32 to vector<8x1xf32>
    %73 = arith.divf %71, %72 : vector<8x1xf32>
    %74 = vector.broadcast %73 : vector<8x1xf32> to vector<8x32xf32>
    %75 = arith.subf %67, %74 : vector<8x32xf32>
    %76 = arith.mulf %75, %75 : vector<8x32xf32>
    %cst_28 = arith.constant dense<0.000000e+00> : vector<8xf32>
    %77 = vector.multi_reduction <add>, %76, %cst_28 [1] : vector<8x32xf32> to vector<8xf32>
    %78 = vector.shape_cast %77 : vector<8xf32> to vector<8x1xf32>
    %cst_29 = arith.constant 3.200000e+01 : f32
    %79 = vector.broadcast %cst_29 : f32 to vector<8x1xf32>
    %80 = arith.divf %78, %79 : vector<8x1xf32>
    %81 = vector.broadcast %73 : vector<8x1xf32> to vector<8x32xf32>
    %82 = arith.subf %67, %81 : vector<8x32xf32>
    %cst_30 = arith.constant 9.99999974E-6 : f32
    %83 = vector.broadcast %cst_30 : f32 to vector<8x1xf32>
    %84 = arith.addf %80, %83 : vector<8x1xf32>
    %85 = math.rsqrt %84 : vector<8x1xf32>
    %86 = vector.broadcast %85 : vector<8x1xf32> to vector<8x32xf32>
    %87 = arith.mulf %82, %86 : vector<8x32xf32>
    %88 = vector.broadcast %68 : vector<1x32xf32> to vector<8x32xf32>
    %89 = arith.mulf %87, %88 : vector<8x32xf32>
    %90 = vector.broadcast %69 : vector<1x32xf32> to vector<8x32xf32>
    %91 = arith.addf %89, %90 : vector<8x32xf32>
    %c0_31 = arith.constant 0 : index
    %c512 = arith.constant 512 : index
    %92 = vector.load %arg4[%c0_31, %c512] : memref<32x1536xbf16, #tpu.memory_space<vmem>>, vector<32x32xbf16>
    %93 = arith.truncf %91 : vector<8x32xf32> to vector<8x32xbf16>
    %cst_32 = arith.constant dense<0.000000e+00> : vector<8x32xf32>
    %94 = tpu.matmul %93, %92, %cst_32 {dimension_numbers = #tpu.dot_dimension_numbers<[1], [0], [0], [1], [0, 0, 1, 1], [], []>} : vector<8x32xbf16>, vector<32x32xbf16>, vector<8x32xf32> -> vector<8x32xf32>
    %c0_33 = arith.constant 0 : index
    %c512_34 = arith.constant 512 : index
    %95 = vector.load %arg6[%c0_33, %c512_34] : memref<1x1536xf32, #tpu.memory_space<vmem>>, vector<1x32xf32>
    %96 = vector.broadcast %95 : vector<1x32xf32> to vector<8x32xf32>
    %97 = arith.addf %94, %96 : vector<8x32xf32>
    %c0_35 = arith.constant 0 : index
    %c640 = arith.constant 640 : index
    %98 = vector.load %arg4[%c0_35, %c640] : memref<32x1536xbf16, #tpu.memory_space<vmem>>, vector<32x256xbf16>
    %99 = arith.truncf %4 : vector<16x32xf32> to vector<16x32xbf16>
    %cst_36 = arith.constant dense<0.000000e+00> : vector<16x256xf32>
    %100 = tpu.matmul %99, %98, %cst_36 {dimension_numbers = #tpu.dot_dimension_numbers<[1], [0], [0], [1], [0, 0, 1, 1], [], []>} : vector<16x32xbf16>, vector<32x256xbf16>, vector<16x256xf32> -> vector<16x256xf32>
    %c0_37 = arith.constant 0 : index
    %c640_38 = arith.constant 640 : index
    %101 = vector.load %arg6[%c0_37, %c640_38] : memref<1x1536xf32, #tpu.memory_space<vmem>>, vector<1x256xf32>
    %102 = vector.broadcast %101 : vector<1x256xf32> to vector<16x256xf32>
    %103 = arith.addf %100, %102 : vector<16x256xf32>
    %104 = vector.extract_strided_slice %103 {offsets = [0, 0], sizes = [16, 32], strides = [1, 1]} : vector<16x256xf32> to vector<16x32xf32>
    %105 = vector.extract_strided_slice %103 {offsets = [0, 128], sizes = [16, 32], strides = [1, 1]} : vector<16x256xf32> to vector<16x32xf32>
    %cst_39 = arith.constant 0.176776692 : f32
    %106 = vector.broadcast %cst_39 : f32 to vector<8x32xf32>
    %107 = arith.mulf %97, %106 : vector<8x32xf32>
    %108 = arith.truncf %107 : vector<8x32xf32> to vector<8x32xbf16>
    %109 = arith.truncf %104 : vector<16x32xf32> to vector<16x32xbf16>
    %cst_40 = arith.constant dense<0.000000e+00> : vector<8x16xf32>
    %110 = tpu.matmul %108, %109, %cst_40 {dimension_numbers = #tpu.dot_dimension_numbers<[1], [1], [0], [0], [0, 0, 1, 0], [], []>} : vector<8x32xbf16>, vector<16x32xbf16>, vector<8x16xf32> -> vector<8x16xf32>
    %c0_41 = arith.constant 0 : index
    %c0_42 = arith.constant 0 : index
    %c0_43 = arith.constant 0 : index
    %111 = vector.load %arg3[%c0_41, %c0_42, %c0_43] : memref<1x2x16xf32, #tpu.memory_space<vmem>>, vector<1x1x16xf32>
    %112 = vector.shape_cast %111 : vector<1x1x16xf32> to vector<1x16xf32>
    %113 = vector.broadcast %112 : vector<1x16xf32> to vector<8x16xf32>
    %114 = arith.addf %110, %113 : vector<8x16xf32>
    %cst_44 = arith.constant dense<0xFF800000> : vector<8xf32>
    %115 = vector.multi_reduction <maximumf>, %114, %cst_44 [1] : vector<8x16xf32> to vector<8xf32>
    %116 = vector.shape_cast %115 : vector<8xf32> to vector<8x1xf32>
    %117 = vector.broadcast %116 : vector<8x1xf32> to vector<8x16xf32>
    %118 = arith.subf %114, %117 : vector<8x16xf32>
    %119 = math.exp %118 : vector<8x16xf32>
    %cst_45 = arith.constant dense<0.000000e+00> : vector<8xf32>
    %120 = vector.multi_reduction <add>, %119, %cst_45 [1] : vector<8x16xf32> to vector<8xf32>
    %121 = vector.shape_cast %120 : vector<8xf32> to vector<8x1xf32>
    %122 = tpu.reciprocal %121 {approx = true} : vector<8x1xf32> -> vector<8x1xf32>
    %123 = vector.broadcast %122 : vector<8x1xf32> to vector<8x16xf32>
    %124 = arith.mulf %119, %123 : vector<8x16xf32>
    %125 = arith.truncf %124 : vector<8x16xf32> to vector<8x16xbf16>
    %126 = arith.truncf %105 : vector<16x32xf32> to vector<16x32xbf16>
    %cst_46 = arith.constant dense<0.000000e+00> : vector<8x32xf32>
    %127 = tpu.matmul %125, %126, %cst_46 {dimension_numbers = #tpu.dot_dimension_numbers<[1], [0], [0], [1], [0, 0, 1, 1], [], []>} : vector<8x16xbf16>, vector<16x32xbf16>, vector<8x32xf32> -> vector<8x32xf32>
    %c0_47 = arith.constant 0 : index
    %c896 = arith.constant 896 : index
    %128 = vector.load %arg4[%c0_47, %c896] : memref<32x1536xbf16, #tpu.memory_space<vmem>>, vector<32x32xbf16>
    %129 = arith.truncf %127 : vector<8x32xf32> to vector<8x32xbf16>
    %cst_48 = arith.constant dense<0.000000e+00> : vector<8x32xf32>
    %130 = tpu.matmul %129, %128, %cst_48 {dimension_numbers = #tpu.dot_dimension_numbers<[1], [0], [0], [1], [0, 0, 1, 1], [], []>} : vector<8x32xbf16>, vector<32x32xbf16>, vector<8x32xf32> -> vector<8x32xf32>
    %c0_49 = arith.constant 0 : index
    %c896_50 = arith.constant 896 : index
    %131 = vector.load %arg6[%c0_49, %c896_50] : memref<1x1536xf32, #tpu.memory_space<vmem>>, vector<1x32xf32>
    %132 = vector.broadcast %131 : vector<1x32xf32> to vector<8x32xf32>
    %133 = arith.addf %130, %132 : vector<8x32xf32>
    %134 = arith.addf %91, %133 : vector<8x32xf32>
    %135 = vector.extract_strided_slice %0 {offsets = [2, 0], sizes = [1, 32], strides = [1, 1]} : vector<8x32xf32> to vector<1x32xf32>
    %136 = vector.extract_strided_slice %0 {offsets = [6, 0], sizes = [1, 32], strides = [1, 1]} : vector<8x32xf32> to vector<1x32xf32>
    %cst_51 = arith.constant dense<0.000000e+00> : vector<8xf32>
    %137 = vector.multi_reduction <add>, %134, %cst_51 [1] : vector<8x32xf32> to vector<8xf32>
    %138 = vector.shape_cast %137 : vector<8xf32> to vector<8x1xf32>
    %cst_52 = arith.constant 3.200000e+01 : f32
    %139 = vector.broadcast %cst_52 : f32 to vector<8x1xf32>
    %140 = arith.divf %138, %139 : vector<8x1xf32>
    %141 = vector.broadcast %140 : vector<8x1xf32> to vector<8x32xf32>
    %142 = arith.subf %134, %141 : vector<8x32xf32>
    %143 = arith.mulf %142, %142 : vector<8x32xf32>
    %cst_53 = arith.constant dense<0.000000e+00> : vector<8xf32>
    %144 = vector.multi_reduction <add>, %143, %cst_53 [1] : vector<8x32xf32> to vector<8xf32>
    %145 = vector.shape_cast %144 : vector<8xf32> to vector<8x1xf32>
    %cst_54 = arith.constant 3.200000e+01 : f32
    %146 = vector.broadcast %cst_54 : f32 to vector<8x1xf32>
    %147 = arith.divf %145, %146 : vector<8x1xf32>
    %148 = vector.broadcast %140 : vector<8x1xf32> to vector<8x32xf32>
    %149 = arith.subf %134, %148 : vector<8x32xf32>
    %cst_55 = arith.constant 9.99999974E-6 : f32
    %150 = vector.broadcast %cst_55 : f32 to vector<8x1xf32>
    %151 = arith.addf %147, %150 : vector<8x1xf32>
    %152 = math.rsqrt %151 : vector<8x1xf32>
    %153 = vector.broadcast %152 : vector<8x1xf32> to vector<8x32xf32>
    %154 = arith.mulf %149, %153 : vector<8x32xf32>
    %155 = vector.broadcast %135 : vector<1x32xf32> to vector<8x32xf32>
    %156 = arith.mulf %154, %155 : vector<8x32xf32>
    %157 = vector.broadcast %136 : vector<1x32xf32> to vector<8x32xf32>
    %158 = arith.addf %156, %157 : vector<8x32xf32>
    %c0_56 = arith.constant 0 : index
    %c1024 = arith.constant 1024 : index
    %159 = vector.load %arg4[%c0_56, %c1024] : memref<32x1536xbf16, #tpu.memory_space<vmem>>, vector<32x64xbf16>
    %160 = arith.truncf %158 : vector<8x32xf32> to vector<8x32xbf16>
    %cst_57 = arith.constant dense<0.000000e+00> : vector<8x64xf32>
    %161 = tpu.matmul %160, %159, %cst_57 {dimension_numbers = #tpu.dot_dimension_numbers<[1], [0], [0], [1], [0, 0, 1, 1], [], []>} : vector<8x32xbf16>, vector<32x64xbf16>, vector<8x64xf32> -> vector<8x64xf32>
    %c0_58 = arith.constant 0 : index
    %c1024_59 = arith.constant 1024 : index
    %162 = vector.load %arg6[%c0_58, %c1024_59] : memref<1x1536xf32, #tpu.memory_space<vmem>>, vector<1x64xf32>
    %163 = vector.broadcast %162 : vector<1x64xf32> to vector<8x64xf32>
    %164 = arith.addf %161, %163 : vector<8x64xf32>
    %cst_60 = arith.constant 0.000000e+00 : f32
    %165 = vector.broadcast %cst_60 : f32 to vector<8x64xf32>
    %166 = arith.maximumf %164, %165 : vector<8x64xf32>
    %c0_61 = arith.constant 0 : index
    %c0_62 = arith.constant 0 : index
    %167 = vector.load %arg5[%c0_61, %c0_62] : memref<64x32xbf16, #tpu.memory_space<vmem>>, vector<64x32xbf16>
    %168 = arith.truncf %166 : vector<8x64xf32> to vector<8x64xbf16>
    %cst_63 = arith.constant dense<0.000000e+00> : vector<8x32xf32>
    %169 = tpu.matmul %168, %167, %cst_63 {dimension_numbers = #tpu.dot_dimension_numbers<[1], [0], [0], [1], [0, 0, 1, 1], [], []>} : vector<8x64xbf16>, vector<64x32xbf16>, vector<8x32xf32> -> vector<8x32xf32>
    %c0_64 = arith.constant 0 : index
    %c1408 = arith.constant 1408 : index
    %170 = vector.load %arg6[%c0_64, %c1408] : memref<1x1536xf32, #tpu.memory_space<vmem>>, vector<1x32xf32>
    %171 = vector.broadcast %170 : vector<1x32xf32> to vector<8x32xf32>
    %172 = arith.addf %169, %171 : vector<8x32xf32>
    %173 = arith.addf %158, %172 : vector<8x32xf32>
    %174 = vector.extract_strided_slice %0 {offsets = [3, 0], sizes = [1, 32], strides = [1, 1]} : vector<8x32xf32> to vector<1x32xf32>
    %175 = vector.extract_strided_slice %0 {offsets = [7, 0], sizes = [1, 32], strides = [1, 1]} : vector<8x32xf32> to vector<1x32xf32>
    %cst_65 = arith.constant dense<0.000000e+00> : vector<8xf32>
    %176 = vector.multi_reduction <add>, %173, %cst_65 [1] : vector<8x32xf32> to vector<8xf32>
    %177 = vector.shape_cast %176 : vector<8xf32> to vector<8x1xf32>
    %cst_66 = arith.constant 3.200000e+01 : f32
    %178 = vector.broadcast %cst_66 : f32 to vector<8x1xf32>
    %179 = arith.divf %177, %178 : vector<8x1xf32>
    %180 = vector.broadcast %179 : vector<8x1xf32> to vector<8x32xf32>
    %181 = arith.subf %173, %180 : vector<8x32xf32>
    %182 = arith.mulf %181, %181 : vector<8x32xf32>
    %cst_67 = arith.constant dense<0.000000e+00> : vector<8xf32>
    %183 = vector.multi_reduction <add>, %182, %cst_67 [1] : vector<8x32xf32> to vector<8xf32>
    %184 = vector.shape_cast %183 : vector<8xf32> to vector<8x1xf32>
    %cst_68 = arith.constant 3.200000e+01 : f32
    %185 = vector.broadcast %cst_68 : f32 to vector<8x1xf32>
    %186 = arith.divf %184, %185 : vector<8x1xf32>
    %187 = vector.broadcast %179 : vector<8x1xf32> to vector<8x32xf32>
    %188 = arith.subf %173, %187 : vector<8x32xf32>
    %cst_69 = arith.constant 9.99999974E-6 : f32
    %189 = vector.broadcast %cst_69 : f32 to vector<8x1xf32>
    %190 = arith.addf %186, %189 : vector<8x1xf32>
    %191 = math.rsqrt %190 : vector<8x1xf32>
    %192 = vector.broadcast %191 : vector<8x1xf32> to vector<8x32xf32>
    %193 = arith.mulf %188, %192 : vector<8x32xf32>
    %194 = vector.broadcast %174 : vector<1x32xf32> to vector<8x32xf32>
    %195 = arith.mulf %193, %194 : vector<8x32xf32>
    %196 = vector.broadcast %175 : vector<1x32xf32> to vector<8x32xf32>
    %197 = arith.addf %195, %196 : vector<8x32xf32>
    %c0_70 = arith.constant 0 : index
    %c1152 = arith.constant 1152 : index
    %198 = vector.load %arg4[%c0_70, %c1152] : memref<32x1536xbf16, #tpu.memory_space<vmem>>, vector<32x32xbf16>
    %199 = arith.truncf %4 : vector<16x32xf32> to vector<16x32xbf16>
    %cst_71 = arith.constant dense<0.000000e+00> : vector<16x32xf32>
    %200 = tpu.matmul %199, %198, %cst_71 {dimension_numbers = #tpu.dot_dimension_numbers<[1], [0], [0], [1], [0, 0, 1, 1], [], []>} : vector<16x32xbf16>, vector<32x32xbf16>, vector<16x32xf32> -> vector<16x32xf32>
    %c0_72 = arith.constant 0 : index
    %c1152_73 = arith.constant 1152 : index
    %201 = vector.load %arg6[%c0_72, %c1152_73] : memref<1x1536xf32, #tpu.memory_space<vmem>>, vector<1x32xf32>
    %202 = vector.broadcast %201 : vector<1x32xf32> to vector<16x32xf32>
    %203 = arith.addf %200, %202 : vector<16x32xf32>
    %cst_74 = arith.constant 0.000000e+00 : f32
    %204 = vector.broadcast %cst_74 : f32 to vector<16x32xf32>
    %205 = arith.maximumf %203, %204 : vector<16x32xf32>
    %c0_75 = arith.constant 0 : index
    %c1280 = arith.constant 1280 : index
    %206 = vector.load %arg4[%c0_75, %c1280] : memref<32x1536xbf16, #tpu.memory_space<vmem>>, vector<32x32xbf16>
    %207 = arith.truncf %205 : vector<16x32xf32> to vector<16x32xbf16>
    %cst_76 = arith.constant dense<0.000000e+00> : vector<16x32xf32>
    %208 = tpu.matmul %207, %206, %cst_76 {dimension_numbers = #tpu.dot_dimension_numbers<[1], [0], [0], [1], [0, 0, 1, 1], [], []>} : vector<16x32xbf16>, vector<32x32xbf16>, vector<16x32xf32> -> vector<16x32xf32>
    %c0_77 = arith.constant 0 : index
    %c1280_78 = arith.constant 1280 : index
    %209 = vector.load %arg6[%c0_77, %c1280_78] : memref<1x1536xf32, #tpu.memory_space<vmem>>, vector<1x32xf32>
    %210 = vector.broadcast %209 : vector<1x32xf32> to vector<16x32xf32>
    %211 = arith.addf %208, %210 : vector<16x32xf32>
    %c0_79 = arith.constant 0 : index
    %c1408_80 = arith.constant 1408 : index
    %212 = vector.load %arg4[%c0_79, %c1408_80] : memref<32x1536xbf16, #tpu.memory_space<vmem>>, vector<32x128xbf16>
    %213 = arith.truncf %197 : vector<8x32xf32> to vector<8x32xbf16>
    %cst_81 = arith.constant dense<0.000000e+00> : vector<8x128xf32>
    %214 = tpu.matmul %213, %212, %cst_81 {dimension_numbers = #tpu.dot_dimension_numbers<[1], [0], [0], [1], [0, 0, 1, 1], [], []>} : vector<8x32xbf16>, vector<32x128xbf16>, vector<8x128xf32> -> vector<8x128xf32>
    %215 = arith.truncf %197 : vector<8x32xf32> to vector<8x32xbf16>
    %216 = arith.truncf %211 : vector<16x32xf32> to vector<16x32xbf16>
    %cst_82 = arith.constant dense<0.000000e+00> : vector<8x16xf32>
    %217 = tpu.matmul %215, %216, %cst_82 {dimension_numbers = #tpu.dot_dimension_numbers<[1], [1], [0], [0], [0, 0, 1, 0], [], []>} : vector<8x32xbf16>, vector<16x32xbf16>, vector<8x16xf32> -> vector<8x16xf32>
    %218 = tpu.iota {dimensions = array<i32: 0>} : vector<16x128xi32>
    %219 = tpu.iota {dimensions = array<i32: 1>} : vector<16x128xi32>
    %c5_i32 = arith.constant 5 : i32
    %220 = vector.broadcast %c5_i32 : i32 to vector<16x128xi32>
    %221 = arith.addi %218, %220 : vector<16x128xi32>
    %222 = arith.cmpi eq, %219, %221 : vector<16x128xi32>
    %223 = arith.extui %222 : vector<16x128xi1> to vector<16x128xi32>
    %224 = arith.sitofp %223 : vector<16x128xi32> to vector<16x128xf32>
    %225 = arith.truncf %217 : vector<8x16xf32> to vector<8x16xbf16>
    %226 = arith.truncf %224 : vector<16x128xf32> to vector<16x128xbf16>
    %cst_83 = arith.constant dense<0.000000e+00> : vector<8x128xf32>
    %227 = tpu.matmul %225, %226, %cst_83 {dimension_numbers = #tpu.dot_dimension_numbers<[1], [0], [0], [1], [0, 0, 1, 1], [], []>} : vector<8x16xbf16>, vector<16x128xbf16>, vector<8x128xf32> -> vector<8x128xf32>
    %c0_84 = arith.constant 0 : index
    %c1 = arith.constant 1 : index
    %c0_85 = arith.constant 0 : index
    %228 = vector.load %arg3[%c0_84, %c1, %c0_85] : memref<1x2x16xf32, #tpu.memory_space<vmem>>, vector<1x1x16xf32>
    %229 = vector.shape_cast %228 : vector<1x1x16xf32> to vector<1x16xf32>
    %230 = arith.truncf %229 : vector<1x16xf32> to vector<1x16xbf16>
    %231 = arith.truncf %224 : vector<16x128xf32> to vector<16x128xbf16>
    %cst_86 = arith.constant dense<0.000000e+00> : vector<1x128xf32>
    %232 = tpu.matmul %230, %231, %cst_86 {dimension_numbers = #tpu.dot_dimension_numbers<[1], [0], [0], [1], [0, 0, 1, 1], [], []>} : vector<1x16xbf16>, vector<16x128xbf16>, vector<1x128xf32> -> vector<1x128xf32>
    %233 = tpu.iota {dimensions = array<i32: 1>} : vector<8x128xi32>
    %cst_87 = arith.constant 5.000000e-01 : f32
    %234 = vector.broadcast %cst_87 : f32 to vector<1x128xf32>
    %235 = arith.cmpf ogt, %232, %234 : vector<1x128xf32>
    %236 = arith.addf %214, %227 : vector<8x128xf32>
    %cst_88 = arith.constant -1.000000e+32 : f32
    %237 = vector.shape_cast %235 : vector<1x128xi1> to vector<1x128xi1>
    %238 = vector.broadcast %237 : vector<1x128xi1> to vector<8x128xi1>
    %239 = vector.broadcast %cst_88 : f32 to vector<8x128xf32>
    %240 = arith.select %238, %239, %236 : vector<8x128xi1>, vector<8x128xf32>
    %c1_i32 = arith.constant 1 : i32
    %241 = vector.broadcast %c1_i32 : i32 to vector<8x128xi32>
    %242 = arith.cmpi sge, %233, %241 : vector<8x128xi32>
    %c21_i32 = arith.constant 21 : i32
    %243 = vector.broadcast %c21_i32 : i32 to vector<8x128xi32>
    %244 = arith.cmpi slt, %233, %243 : vector<8x128xi32>
    %245 = arith.andi %242, %244 : vector<8x128xi1>
    %cst_89 = arith.constant -1.000000e+24 : f32
    %246 = vector.broadcast %cst_89 : f32 to vector<8x128xf32>
    %247 = arith.select %245, %240, %246 : vector<8x128xi1>, vector<8x128xf32>
    %c0_90 = arith.constant 0 : index
    %c0_91 = arith.constant 0 : index
    %c0_92 = arith.constant 0 : index
    %248 = vector.load %arg8[%c0_90, %c0_91, %c0_92] : memref<1x8x128xf32, #tpu.memory_space<vmem>>, vector<1x8x128xf32>
    %249 = vector.shape_cast %248 : vector<1x8x128xf32> to vector<8x128xf32>
    %250 = vector.shape_cast %247 : vector<8x128xf32> to vector<1x8x128xf32>
    tpu.vector_store %arg8[%c0_90, %c0_91, %c0_92], %250 {strides = array<i32>} : memref<1x8x128xf32, #tpu.memory_space<vmem>>, vector<1x8x128xf32>,
    return
  }
  func.func @transform_0(%arg0: i32) -> (i32, i32, i32) {
    %c0_i32 = arith.constant 0 : i32
    %c0_i32_0 = arith.constant 0 : i32
    %c0_i32_1 = arith.constant 0 : i32
    return %arg0, %c0_i32, %c0_i32_0 : i32, i32, i32
  }
  func.func @transform_1(%arg0: i32) -> (i32, i32, i32) {
    %c0_i32 = arith.constant 0 : i32
    %c0_i32_0 = arith.constant 0 : i32
    %c0_i32_1 = arith.constant 0 : i32
    return %arg0, %c0_i32, %c0_i32_0 : i32, i32, i32
  }
  func.func @transform_2(%arg0: i32) -> (i32, i32, i32) {
    %c0_i32 = arith.constant 0 : i32
    %c0_i32_0 = arith.constant 0 : i32
    %c0_i32_1 = arith.constant 0 : i32
    return %arg0, %c0_i32, %c0_i32_0 : i32, i32, i32
  }
  func.func @transform_3(%arg0: i32) -> (i32, i32) {
    %c0_i32 = arith.constant 0 : i32
    %c0_i32_0 = arith.constant 0 : i32
    %c0_i32_1 = arith.constant 0 : i32
    return %c0_i32, %c0_i32_0 : i32, i32
  }
  func.func @transform_4(%arg0: i32) -> (i32, i32) {
    %c0_i32 = arith.constant 0 : i32
    %c0_i32_0 = arith.constant 0 : i32
    %c0_i32_1 = arith.constant 0 : i32
    return %c0_i32, %c0_i32_0 : i32, i32
  }
  func.func @transform_5(%arg0: i32) -> (i32, i32) {
    %c0_i32 = arith.constant 0 : i32
    %c0_i32_0 = arith.constant 0 : i32
    %c0_i32_1 = arith.constant 0 : i32
    return %c0_i32, %c0_i32_0 : i32, i32
  }
  func.func @transform_6(%arg0: i32) -> (i32, i32) {
    %c0_i32 = arith.constant 0 : i32
    %c0_i32_0 = arith.constant 0 : i32
    %c0_i32_1 = arith.constant 0 : i32
    return %c0_i32, %c0_i32_0 : i32, i32
  }
  func.func @transform_7(%arg0: i32) -> (i32, i32, i32) {
    %c0_i32 = arith.constant 0 : i32
    %c0_i32_0 = arith.constant 0 : i32
    %c0_i32_1 = arith.constant 0 : i32
    return %arg0, %c0_i32, %c0_i32_0 : i32, i32, i32
  }
}

</mosaic_0001>

<llo_original>
// kernel: fbart_decoder_forward.1
$region0: #{fbart_decoder_forward.1}
  #allocation0 [shape = 'u32[]', space=smem, size = 0x4, offset = 0x4, fixed_abs, tag = 'smem constant byte address 0x4 - core index']
  #allocation1 [shape = 'u32[144,128]{1,0:T(1,128)}', space=vmem, size = 0x12000, scoped, tag = 'internal scratch']
  %s0 = inlined_call_operand.vmem [shape: f32[2,8,32], index: 0, kind: input, shape index: {}]
  %s1 = inlined_call_operand.vmem [shape: f32[2,16,32], index: 1, kind: input, shape index: {}]
  %s2 = inlined_call_operand.vmem [shape: f32[2,2,16], index: 2, kind: input, shape index: {}]
  %s3 = inlined_call_operand.vmem [shape: bf16[32,1536], index: 3, kind: input, shape index: {}]
  %s4 = inlined_call_operand.vmem [shape: bf16[64,32], index: 4, kind: input, shape index: {}]
  %s5 = inlined_call_operand.vmem [shape: f32[1,1536], index: 5, kind: input, shape index: {}]
  %s6 = inlined_call_operand.vmem [shape: f32[8,32], index: 6, kind: input, shape index: {}]
  %s7 = inlined_call_operand.hbm [shape: f32[2,8,128], index: 7, kind: output, shape index: {}]
  %s8 = sld [smem:[#allocation0]]
  $region61: #{fbart_decoder_forward.1} parent=0
    _
  %s10 = ssub.s32 1, %s8
  %s11 = scalar_select 0, %s10, %s8
  $region1: #{fbart_decoder_forward.1} parent=0
    #allocation2 [shape = 'u8[8192]{0}', space=vmem, size = 0x2000, scoped, tag = 'output window, operand 0']
    #allocation3 [shape = 's32[2]{0}', space=sflag, size = 0x8, scoped, tag = 'scoped memory for fbart_decoder_forward.1']
    %12 = vsyncpa [#allocation3], 0
    %s13 = scalar_lea.sflag [#allocation3], 1
    %14 = vsyncpa %s13, 0
    loop: start=0, step=1, limit=4
    $region2: #{fbart_decoder_forward.1} parent=1 // loop_pre_header
      _
    $region3: #{fbart_decoder_forward.1} parent=1 // loop_header
      %s16 = sphi 0, %s20
      %p17 = scmp.ge.s32.totalorder %s16, 4
      %s26 = sphi 0, %s28
      %s29 = sphi 0, %s26
      %s30 = sphi 0, %s29
      %s46 = sphi 0, %s30
      %s52 = sphi 0, %s54
      %s55 = sphi 0, %s52
      %s56 = sphi 0, %s55
      %s72 = sphi 0, %s56
      %s78 = sphi 0, %s80
      %s81 = sphi 0, %s78
      %s82 = sphi 0, %s81
      %s98 = sphi 0, %s82
      %s102 = sphi 0, %s102
      %s104 = sphi 0, %s102
      %s105 = sphi 0, %s104
      %s119 = sphi 0, %s105
      %s123 = sphi 0, %s123
      %s125 = sphi 0, %s123
      %s126 = sphi 0, %s125
      %s140 = sphi 0, %s126
      %s144 = sphi 0, %s144
      %s146 = sphi 0, %s144
      %s147 = sphi 0, %s146
      %s161 = sphi 0, %s147
      %s165 = sphi 0, %s165
      %s167 = sphi 0, %s165
      %s168 = sphi 0, %s167
      %s182 = sphi 0, %s168
      %s188 = sphi 0, %s190
      %s191 = sphi 0, %s188
      %s192 = sphi 0, %s191
      %s208 = sphi 0, %s192
    $region4: #{fbart_decoder_forward.1} parent=1 // loop_header_branch
      %19 = sbr.rel (%p17) target = $region8
    $region5: #{fbart_decoder_forward.1} parent=1 // loop_body
      %s21 = ssub.s32 %s16, 1
      %s22 = ssub.s32 %s16, 2
      %s23 = sadd.s32 %s16, 1
      %s24 = ssub.s32 %s16, %s23
      %p25 = scmp.eq.s32.totalorder %s24, 0
      %s27 = sadd.s32 %s26, 1
      %s28 = scalar_select %p25, %s26, %s27
      %p31 = pneg %p25
      %p32 = scmp.eq.s32.totalorder %s16, 1
      %p33 = por %p31, %p32
      %p34 = scmp.ne.s32.totalorder %s26, %s29
      %p35 = scmp.eq.s32.totalorder %s16, 0
      %p36 = por %p34, %p35
      %p37 = scmp.ne.s32.totalorder %s26, %s29
      %p38 = scmp.eq.s32.totalorder %s21, 1
      %p39 = por %p37, %p38
      %p40 = scmp.ne.s32.totalorder %s29, %s30
      %p41 = scmp.eq.s32.totalorder %s21, 0
      %p42 = por %p40, %p41
      %p43 = scmp.ne.s32.totalorder %s29, %s30
      %p44 = scmp.eq.s32.totalorder %s22, 1
      %p45 = por %p43, %p44
      %p47 = scmp.ne.s32.totalorder %s30, %s46
      %p48 = scmp.eq.s32.totalorder %s22, 0
      %p49 = por %p47, %p48
      %s50 = ssub.s32 %s16, %s23
      %p51 = scmp.eq.s32.totalorder %s50, 0
      %s53 = sadd.s32 %s52, 1
      %s54 = scalar_select %p51, %s52, %s53
      %p57 = pneg %p51
      %p58 = scmp.eq.s32.totalorder %s16, 1
      %p59 = por %p57, %p58
      %p60 = scmp.ne.s32.totalorder %s52, %s55
      %p61 = scmp.eq.s32.totalorder %s16, 0
      %p62 = por %p60, %p61
      %p63 = scmp.ne.s32.totalorder %s52, %s55
      %p64 = scmp.eq.s32.totalorder %s21, 1
      %p65 = por %p63, %p64
      %p66 = scmp.ne.s32.totalorder %s55, %s56
      %p67 = scmp.eq.s32.totalorder %s21, 0
      %p68 = por %p66, %p67
      %p69 = scmp.ne.s32.totalorder %s55, %s56
      %p70 = scmp.eq.s32.totalorder %s22, 1
      %p71 = por %p69, %p70
      %p73 = scmp.ne.s32.totalorder %s56, %s72
      %p74 = scmp.eq.s32.totalorder %s22, 0
      %p75 = por %p73, %p74
      %s76 = ssub.s32 %s16, %s23
      %p77 = scmp.eq.s32.totalorder %s76, 0
      %s79 = sadd.s32 %s78, 1
      %s80 = scalar_select %p77, %s78, %s79
      %p83 = pneg %p77
      %p84 = scmp.eq.s32.totalorder %s16, 1
      %p85 = por %p83, %p84
      %p86 = scmp.ne.s32.totalorder %s78, %s81
      %p87 = scmp.eq.s32.totalorder %s16, 0
      %p88 = por %p86, %p87
      %p89 = scmp.ne.s32.totalorder %s78, %s81
      %p90 = scmp.eq.s32.totalorder %s21, 1
      %p91 = por %p89, %p90
      %p92 = scmp.ne.s32.totalorder %s81, %s82
      %p93 = scmp.eq.s32.totalorder %s21, 0
      %p94 = por %p92, %p93
      %p95 = scmp.ne.s32.totalorder %s81, %s82
      %p96 = scmp.eq.s32.totalorder %s22, 1
      %p97 = por %p95, %p96
      %p99 = scmp.ne.s32.totalorder %s82, %s98
      %p100 = scmp.eq.s32.totalorder %s22, 0
      %p101 = por %p99, %p100
      %s103 = sadd.s32 %s102, 1
      %p106 = scmp.eq.s32.totalorder %s16, 1
      %p107 = scmp.ne.s32.totalorder %s102, %s104
      %p108 = scmp.eq.s32.totalorder %s16, 0
      %p109 = por %p107, %p108
      %p110 = scmp.ne.s32.totalorder %s102, %s104
      %p111 = scmp.eq.s32.totalorder %s21, 1
      %p112 = por %p110, %p111
      %p113 = scmp.ne.s32.totalorder %s104, %s105
      %p114 = scmp.eq.s32.totalorder %s21, 0
      %p115 = por %p113, %p114
      %p116 = scmp.ne.s32.totalorder %s104, %s105
      %p117 = scmp.eq.s32.totalorder %s22, 1
      %p118 = por %p116, %p117
      %p120 = scmp.ne.s32.totalorder %s105, %s119
      %p121 = scmp.eq.s32.totalorder %s22, 0
      %p122 = por %p120, %p121
      %s124 = sadd.s32 %s123, 1
      %p127 = scmp.eq.s32.totalorder %s16, 1
      %p128 = scmp.ne.s32.totalorder %s123, %s125
      %p129 = scmp.eq.s32.totalorder %s16, 0
      %p130 = por %p128, %p129
      %p131 = scmp.ne.s32.totalorder %s123, %s125
      %p132 = scmp.eq.s32.totalorder %s21, 1
      %p133 = por %p131, %p132
      %p134 = scmp.ne.s32.totalorder %s125, %s126
      %p135 = scmp.eq.s32.totalorder %s21, 0
      %p136 = por %p134, %p135
      %p137 = scmp.ne.s32.totalorder %s125, %s126
      %p138 = scmp.eq.s32.totalorder %s22, 1
      %p139 = por %p137, %p138
      %p141 = scmp.ne.s32.totalorder %s126, %s140
      %p142 = scmp.eq.s32.totalorder %s22, 0
      %p143 = por %p141, %p142
      %s145 = sadd.s32 %s144, 1
      %p148 = scmp.eq.s32.totalorder %s16, 1
      %p149 = scmp.ne.s32.totalorder %s144, %s146
      %p150 = scmp.eq.s32.totalorder %s16, 0
      %p151 = por %p149, %p150
      %p152 = scmp.ne.s32.totalorder %s144, %s146
      %p153 = scmp.eq.s32.totalorder %s21, 1
      %p154 = por %p152, %p153
      %p155 = scmp.ne.s32.totalorder %s146, %s147
      %p156 = scmp.eq.s32.totalorder %s21, 0
      %p157 = por %p155, %p156
      %p158 = scmp.ne.s32.totalorder %s146, %s147
      %p159 = scmp.eq.s32.totalorder %s22, 1
      %p160 = por %p158, %p159
      %p162 = scmp.ne.s32.totalorder %s147, %s161
      %p163 = scmp.eq.s32.totalorder %s22, 0
      %p164 = por %p162, %p163
      %s166 = sadd.s32 %s165, 1
      %p169 = scmp.eq.s32.totalorder %s16, 1
      %p170 = scmp.ne.s32.totalorder %s165, %s167
      %p171 = scmp.eq.s32.totalorder %s16, 0
      %p172 = por %p170, %p171
      %p173 = scmp.ne.s32.totalorder %s165, %s167
      %p174 = scmp.eq.s32.totalorder %s21, 1
      %p175 = por %p173, %p174
      %p176 = scmp.ne.s32.totalorder %s167, %s168
      %p177 = scmp.eq.s32.totalorder %s21, 0
      %p178 = por %p176, %p177
      %p179 = scmp.ne.s32.totalorder %s167, %s168
      %p180 = scmp.eq.s32.totalorder %s22, 1
      %p181 = por %p179, %p180
      %p183 = scmp.ne.s32.totalorder %s168, %s182
      %p184 = scmp.eq.s32.totalorder %s22, 0
      %p185 = por %p183, %p184
      %s186 = ssub.s32 %s16, %s23
      %p187 = scmp.eq.s32.totalorder %s186, 0
      %s189 = sadd.s32 %s188, 1
      %s190 = scalar_select %p187, %s188, %s189
      %p193 = pneg %p187
      %p194 = scmp.eq.s32.totalorder %s16, 1
      %p195 = por %p193, %p194
      %p196 = scmp.ne.s32.totalorder %s188, %s191
      %p197 = scmp.eq.s32.totalorder %s16, 0
      %p198 = por %p196, %p197
      %p199 = scmp.ne.s32.totalorder %s188, %s191
      %p200 = scmp.eq.s32.totalorder %s21, 1
      %p201 = por %p199, %p200
      %p202 = scmp.ne.s32.totalorder %s191, %s192
      %p203 = scmp.eq.s32.totalorder %s21, 0
      %p204 = por %p202, %p203
      %p205 = scmp.ne.s32.totalorder %s191, %s192
      %p206 = scmp.eq.s32.totalorder %s22, 1
      %p207 = por %p205, %p206
      %p209 = scmp.ne.s32.totalorder %s192, %s208
      %p210 = scmp.eq.s32.totalorder %s22, 0
      %p211 = por %p209, %p210
      %p212 = scmp.le.s32.totalorder 1, %s16
      %p213 = scmp.lt.s32.totalorder %s16, 3
      %p214 = pnand %p212, %p213
      %p215 = pneg %p214
      // Predicated region
      $region9: #{fbart_decoder_forward.1} parent=5 // pred_check
        _
      $region10: #{fbart_decoder_forward.1} parent=5 // pred_check_branch
        %217 = sbr.rel (%p214) target = $region12
      $region11: #{fbart_decoder_forward.1} parent=5 // pred_region
        %s218 = ssub.s32 %s16, 1
        // Predicated region
        $region13: #{fbart_decoder_forward.1} parent=11 // pred_check
          %p219 = pneg %p115
        $region14: #{fbart_decoder_forward.1} parent=11 // pred_check_branch
          %221 = sbr.rel (%p219) target = $region16
        $region15: #{fbart_decoder_forward.1} parent=11 // pred_region
          _
        $region16: #{fbart_decoder_forward.1} parent=11 // pred_fallthru
          _
        // Predicated region
        $region17: #{fbart_decoder_forward.1} parent=11 // pred_check
          %p222 = pneg %p136
        $region18: #{fbart_decoder_forward.1} parent=11 // pred_check_branch
          %224 = sbr.rel (%p222) target = $region20
        $region19: #{fbart_decoder_forward.1} parent=11 // pred_region
          _
        $region20: #{fbart_decoder_forward.1} parent=11 // pred_fallthru
          _
        // Predicated region
        $region21: #{fbart_decoder_forward.1} parent=11 // pred_check
          %p225 = pneg %p157
        $region22: #{fbart_decoder_forward.1} parent=11 // pred_check_branch
          %227 = sbr.rel (%p225) target = $region24
        $region23: #{fbart_decoder_forward.1} parent=11 // pred_region
          _
        $region24: #{fbart_decoder_forward.1} parent=11 // pred_fallthru
          _
        // Predicated region
        $region25: #{fbart_decoder_forward.1} parent=11 // pred_check
          %p228 = pneg %p178
        $region26: #{fbart_decoder_forward.1} parent=11 // pred_check_branch
          %230 = sbr.rel (%p228) target = $region28
        $region27: #{fbart_decoder_forward.1} parent=11 // pred_region
          _
        $region28: #{fbart_decoder_forward.1} parent=11 // pred_fallthru
          _
      $region12: #{fbart_decoder_forward.1} parent=5 // pred_fallthru
        _
      %p231 = scmp.lt.s32.totalorder %s16, 2
      // Predicated region
      $region29: #{fbart_decoder_forward.1} parent=5 // pred_check
        %p232 = pneg %p231
      $region30: #{fbart_decoder_forward.1} parent=5 // pred_check_branch
        %234 = sbr.rel (%p232) target = $region32
      $region31: #{fbart_decoder_forward.1} parent=5 // pred_region
        // Predicated region
        $region33: #{fbart_decoder_forward.1} parent=31 // pred_check
          %p235 = pneg %p36
        $region34: #{fbart_decoder_forward.1} parent=31 // pred_check_branch
          %237 = sbr.rel (%p235) target = $region36
        $region35: #{fbart_decoder_forward.1} parent=31 // pred_region
          %p238 = scmp.lt.s32.totalorder %s16, 1
          %s239 = scalar_select %p238, %s16, 1
          %s240 = smul.addr %s239, 8
          %s241 = scalar_lea.vmem %s0, %s240
        $region36: #{fbart_decoder_forward.1} parent=31 // pred_fallthru
          _
        // Predicated region
        $region37: #{fbart_decoder_forward.1} parent=31 // pred_check
          %p242 = pneg %p62
        $region38: #{fbart_decoder_forward.1} parent=31 // pred_check_branch
          %244 = sbr.rel (%p242) target = $region40
        $region39: #{fbart_decoder_forward.1} parent=31 // pred_region
          %p245 = scmp.lt.s32.totalorder %s16, 1
          %s246 = scalar_select %p245, %s16, 1
          %s247 = smul.addr %s246, 2
          %s248 = smul.addr %s247, 8
          %s249 = scalar_lea.vmem %s1, %s248
        $region40: #{fbart_decoder_forward.1} parent=31 // pred_fallthru
          _
        // Predicated region
        $region41: #{fbart_decoder_forward.1} parent=31 // pred_check
          %p250 = pneg %p88
        $region42: #{fbart_decoder_forward.1} parent=31 // pred_check_branch
          %252 = sbr.rel (%p250) target = $region44
        $region43: #{fbart_decoder_forward.1} parent=31 // pred_region
          %p253 = scmp.lt.s32.totalorder %s16, 1
          %s254 = scalar_select %p253, %s16, 1
          %s255 = smul.addr %s254, 2
          %s256 = scalar_lea.vmem %s2, %s255
        $region44: #{fbart_decoder_forward.1} parent=31 // pred_fallthru
          _
      $region32: #{fbart_decoder_forward.1} parent=5 // pred_fallthru
        _
      %p257 = scmp.le.s32.totalorder 1, %s16
      %p258 = scmp.lt.s32.totalorder %s16, 3
      %p259 = pnand %p257, %p258
      %p260 = pneg %p259
      // Predicated region
      $region45: #{fbart_decoder_forward.1} parent=5 // pred_check
        _
      $region46: #{fbart_decoder_forward.1} parent=5 // pred_check_branch
        %262 = sbr.rel (%p259) target = $region48
      $region47: #{fbart_decoder_forward.1} parent=5 // pred_region
        %s263 = ssub.s32 %s16, 1
        %p264 = scmp.lt.s32.totalorder %s21, 1
        %s265 = scalar_select %p264, %s21, 1
        %s266 = smul.addr %s265, 8
        %s267 = scalar_lea.vmem %s0, %s266
        %p268 = pneg %p42
        %p269 = pneg %p39
        %p270 = scmp.lt.s32.totalorder %s21, 1
        %s271 = scalar_select %p270, %s21, 1
        %s272 = smul.addr %s271, 2
        %s273 = smul.addr %s272, 8
        %s274 = scalar_lea.vmem %s1, %s273
        %p275 = pneg %p68
        %p276 = pneg %p65
        %p277 = scmp.lt.s32.totalorder %s21, 1
        %s278 = scalar_select %p277, %s21, 1
        %s279 = smul.addr %s278, 2
        %s280 = scalar_lea.vmem %s2, %s279
        %p281 = pneg %p94
        %p282 = pneg %p91
        %p283 = pneg %p115
        %p284 = pneg %p112
        %p285 = pneg %p136
        %p286 = pneg %p133
        %p287 = pneg %p157
        %p288 = pneg %p154
        %p289 = pneg %p178
        %p290 = pneg %p175
        %p291 = pneg %p204
        %p292 = pneg %p201
        %s293 = sand.u32 %s191, 1
        %s294 = scalar_lea.sflag [#allocation3], %s293
        %s295 = sand.u32 %s191, 1
        %s296 = smul.addr %s295, 8
        %s297 = scalar_lea.vmem [#allocation2], %s296
        %p298 = scmp.lt.s32.totalorder %s21, 1
        %s299 = scalar_select %p298, %s21, 1
        %s300 = smul.addr %s299, 8
        %s301 = scalar_lea.vmem %s0, %s300
        %p302 = scmp.lt.s32.totalorder %s21, 1
        %s303 = scalar_select %p302, %s21, 1
        %s304 = smul.addr %s303, 2
        %s305 = smul.addr %s304, 8
        %s306 = scalar_lea.vmem %s1, %s305
        %p307 = scmp.lt.s32.totalorder %s21, 1
        %s308 = scalar_select %p307, %s21, 1
        %s309 = smul.addr %s308, 2
        %s310 = scalar_lea.vmem %s2, %s309
        %v312 = vld [vmem:[%s6] sm:$0xff]
        %v313 = vld [vmem:[%s301] sm:$0xff]
        %v314 = vld [vmem:[%s306] sm:$0xff]
        %v315 = vld [vmem:[%s306 + $0x8] sm:$0xff]
        %vm316 = vcmask 261120
        %v317 = vsel %vm316, %v313, 0.0
        %318 = vadd.xlane.f32.xlu0 %v317
        %v319 = vpop.xlane.xlu0 %318
        %v320 = vrcp.pop 32.0
        %v321 = vmul.f32 %v319, %v320
        %v322 = vsub.f32 %v313, %v321
        %v323 = vmul.f32 %v322, %v322
        %v324 = vsel %vm316, %v323, 0.0
        %325 = vadd.xlane.f32.xlu0 %v324
        %v326 = vpop.xlane.xlu0 %325
        %v327 = vmul.f32 %v326, %v320
        %v328 = vadd.f32 %v327, 1e-05
        %v329 = vrsqrt.pop %v328
        %v330 = vmul.f32 %v322, %v329
        %v331 = vlaneseq
        %v332 = vshrl.u32 %v331, 7
        %v333 = vsub.s32 0, %v332
        %v334 = vrot.slane %v312, %v333
        %v335 = vmul.f32 %v330, %v334
        %v336 = vlaneseq
        %v337 = vshrl.u32 %v336, 7
        %v338 = vsub.s32 4, %v337
        %v339 = vrot.slane %v312, %v338
        %v340 = vadd.f32 %v335, %v339
        %v341 = vld [vmem:[%s3] sm:$0xff]
        %v342 = vld [vmem:[%s3 + $0x8] sm:$0xf]
        %v343 = vld [vmem:[%s3 + $0x30] sm:$0xff]
        %v344 = vld [vmem:[%s3 + $0x38] sm:$0xf]
        %v345 = vld [vmem:[%s3 + $0x60] sm:$0xff]
        %v346 = vld [vmem:[%s3 + $0x68] sm:$0xf]
        %v347 = vld [vmem:[%s3 + $0x90] sm:$0xff]
        %v348 = vld [vmem:[%s3 + $0x98] sm:$0xf]
        %v349 = vpack.c.bf16 %v340, %v340
        %v350 = vld [vmem:[%s5] sm:$0x7]
        %v352 = vlaneseq
        %v353 = vshrl.u32 %v352, 7
        %v354 = vsub.s32 0, %v353
        %v355 = vrot.slane %v350, %v354
        %v356 = vlaneseq
        %v357 = vshrl.u32 %v356, 7
        %v358 = vsub.s32 1, %v357
        %v359 = vrot.slane %v350, %v358
        %v360 = vlaneseq
        %v361 = vshrl.u32 %v360, 7
        %v362 = vsub.s32 2, %v361
        %v363 = vrot.slane %v350, %v362
        %v375 = vunpack.c.l.b16 %v341
        %v376 = vunpack.c.h.b16 %v341
        %v377 = vunpack.c.l.b16 %v342
        %v378 = vunpack.c.l.b16 %v343
        %v379 = vunpack.c.h.b16 %v343
        %v380 = vunpack.c.l.b16 %v344
        %v381 = vunpack.c.l.b16 %v345
        %v382 = vunpack.c.h.b16 %v345
        %v383 = vunpack.c.l.b16 %v346
        %v384 = vunpack.c.l.b16 %v347
        %v385 = vunpack.c.h.b16 %v347
        %v386 = vunpack.c.l.b16 %v348
        %v387 = vpack.c.b16 %v378, %v375
        %v388 = vpack.c.b16 %v379, %v376
        %v389 = vpack.c.b16 %v380, %v377
        %v390 = vpack.c.b16 %v384, %v381
        %v391 = vpack.c.b16 %v385, %v382
        %v392 = vpack.c.b16 %v386, %v383
        %v400 = vsel %vm316, %v349, 0
        %402 = vmatprep.subr.bf16.mxu0 %v388
        %403 = vmatpush1.bf16.msra.mxu0 %v387
        %404 = vmatprep.subr.bf16.mxu0 %v391
        %405 = vmatpush1.bf16.msra.mxu0 %v390
        %406 = vmatprep.subr.bf16.mxu0 0
        %407 = vmatpush1.bf16.msra.mxu0 0
        %408 = vmatprep.subr.bf16.mxu0 0
        %409 = vmatpush1.bf16.msra.mxu0 0
        %410 = vmatprep.subr.bf16.mxu0 0
        %411 = vmatpush1.bf16.msra.mxu0 0
        %412 = vmatprep.subr.bf16.mxu0 0
        %413 = vmatpush1.bf16.msra.mxu0 0
        %414 = vmatprep.subr.bf16.mxu0 0
        %415 = vmatpush1.bf16.msra.mxu0 0
        %416 = vmatprep.subr.bf16.mxu0 0
        %417 = vmatpush1.bf16.msra.mxu0 0
        %418 = vmatprep.subr.bf16.mxu0 0
        %419 = vmatpush1.bf16.msra.mxu0 0
        %420 = vmatprep.subr.bf16.mxu0 0
        %421 = vmatpush1.bf16.msra.mxu0 0
        %422 = vmatprep.subr.bf16.mxu0 0
        %423 = vmatpush1.bf16.msra.mxu0 0
        %424 = vmatprep.subr.bf16.mxu0 0
        %425 = vmatpush1.bf16.msra.mxu0 0
        %426 = vmatprep.subr.bf16.mxu0 0
        %427 = vmatpush1.bf16.msra.mxu0 0
        %428 = vmatprep.subr.bf16.mxu0 0
        %429 = vmatpush1.bf16.msra.mxu0 0
        %430 = vmatprep.subr.bf16.mxu0 0
        %431 = vmatpush1.bf16.msra.mxu0 0
        %432 = vmatprep.subr.bf16.mxu0 0
        %433 = vmatpush1.bf16.msra.mxu0 0
        %434 = vmatprep.mubr.bf16.mxu0 0
        %435 = vmatmul.mubr.bf16.gmra.mrb[0].mxu0 %v400
        %v436 = vpop.f32.mrb[0].mxu0
        %v437 = vadd.f32 %v355, %v436
        %v438 = vpop.f32.mrb[0].mxu0
        %v439 = vadd.f32 %v359, %v438
        %v440 = vpop.f32.mrb[0].mxu0
        %v441 = vpop.f32.mrb[0].mxu0
        %442 = vdwg.mxu0
        %443 = vmatprep.subr.bf16.mxu0 0
        %444 = vmatpush1.bf16.msra.mxu0 %v389
        %445 = vmatprep.subr.bf16.mxu0 0
        %446 = vmatpush1.bf16.msra.mxu0 %v392
        %447 = vmatprep.subr.bf16.mxu0 0
        %448 = vmatpush1.bf16.msra.mxu0 0
        %449 = vmatprep.subr.bf16.mxu0 0
        %450 = vmatpush1.bf16.msra.mxu0 0
        %451 = vmatprep.subr.bf16.mxu0 0
        %452 = vmatpush1.bf16.msra.mxu0 0
        %453 = vmatprep.subr.bf16.mxu0 0
        %454 = vmatpush1.bf16.msra.mxu0 0
        %455 = vmatprep.subr.bf16.mxu0 0
        %456 = vmatpush1.bf16.msra.mxu0 0
        %457 = vmatprep.subr.bf16.mxu0 0
        %458 = vmatpush1.bf16.msra.mxu0 0
        %459 = vmatprep.subr.bf16.mxu0 0
        %460 = vmatpush1.bf16.msra.mxu0 0
        %461 = vmatprep.subr.bf16.mxu0 0
        %462 = vmatpush1.bf16.msra.mxu0 0
        %463 = vmatprep.subr.bf16.mxu0 0
        %464 = vmatpush1.bf16.msra.mxu0 0
        %465 = vmatprep.subr.bf16.mxu0 0
        %466 = vmatpush1.bf16.msra.mxu0 0
        %467 = vmatprep.subr.bf16.mxu0 0
        %468 = vmatpush1.bf16.msra.mxu0 0
        %469 = vmatprep.subr.bf16.mxu0 0
        %470 = vmatpush1.bf16.msra.mxu0 0
        %471 = vmatprep.subr.bf16.mxu0 0
        %472 = vmatpush1.bf16.msra.mxu0 0
        %473 = vmatprep.subr.bf16.mxu0 0
        %474 = vmatpush1.bf16.msra.mxu0 0
        %475 = vmatprep.mubr.bf16.mxu0 0
        %476 = vmatmul.mubr.bf16.gmra.mrb[0].mxu0 %v400
        %v477 = vpop.f32.mrb[0].mxu0
        %v478 = vadd.f32 %v363, %v477
        %v479 = vpop.f32.mrb[0].mxu0
        %v480 = vpop.f32.mrb[0].mxu0
        %v481 = vpop.f32.mrb[0].mxu0
        %482 = vdwg.mxu0
        %v483 = vmul.f32 %v437, 0.17677669
        %v484 = vpack.c.bf16 %v483, %v483
        %v485 = vpack.c.bf16 %v439, %v439
        %v487 = vsel %vm316, %v484, 0
        %v490 = vsel %vm316, %v485, 0
        %492 = vmatprep.subr.bf16.mxu0 0
        %493 = vmatpush1.bf16.xpose.msra.mxu0 %v490
        %494 = vmatprep.subr.bf16.mxu0 0
        %495 = vmatpush1.bf16.xpose.msra.mxu0 0
        %496 = vmatprep.subr.bf16.mxu0 0
        %497 = vmatpush1.bf16.xpose.msra.mxu0 0
        %498 = vmatprep.subr.bf16.mxu0 0
        %499 = vmatpush1.bf16.xpose.msra.mxu0 0
        %500 = vmatprep.subr.bf16.mxu0 0
        %501 = vmatpush1.bf16.xpose.msra.mxu0 0
        %502 = vmatprep.subr.bf16.mxu0 0
        %503 = vmatpush1.bf16.xpose.msra.mxu0 0
        %504 = vmatprep.subr.bf16.mxu0 0
        %505 = vmatpush1.bf16.xpose.msra.mxu0 0
        %506 = vmatprep.subr.bf16.mxu0 0
        %507 = vmatpush1.bf16.xpose.msra.mxu0 0
        %508 = vmatprep.subr.bf16.mxu0 0
        %509 = vmatpush1.bf16.xpose.msra.mxu0 0
        %510 = vmatprep.subr.bf16.mxu0 0
        %511 = vmatpush1.bf16.xpose.msra.mxu0 0
        %512 = vmatprep.subr.bf16.mxu0 0
        %513 = vmatpush1.bf16.xpose.msra.mxu0 0
        %514 = vmatprep.subr.bf16.mxu0 0
        %515 = vmatpush1.bf16.xpose.msra.mxu0 0
        %516 = vmatprep.subr.bf16.mxu0 0
        %517 = vmatpush1.bf16.xpose.msra.mxu0 0
        %518 = vmatprep.subr.bf16.mxu0 0
        %519 = vmatpush1.bf16.xpose.msra.mxu0 0
        %520 = vmatprep.subr.bf16.mxu0 0
        %521 = vmatpush1.bf16.xpose.msra.mxu0 0
        %522 = vmatprep.subr.bf16.mxu0 0
        %523 = vmatpush1.bf16.xpose.msra.mxu0 0
        %524 = vmatprep.mubr.bf16.mxu0 0
        %525 = vmatmul.mubr.bf16.gmra.mrb[0].mxu0 %v487
        %v526 = vpop.f32.mrb[0].mxu0
        %v527 = vadd.f32 0.0, %v526
        %v528 = vpop.f32.mrb[0].mxu0
        %v529 = vpop.f32.mrb[0].mxu0
        %v530 = vpop.f32.mrb[0].mxu0
        %531 = vdwg.mxu0
        %v532 = vlaneseq
        %v533 = vshrl.u32 %v532, 7
        %v534 = vlaneseq
        %v535 = vand.u32 %v534, 127
        %vm536 = vcmp.gt.s32.totalorder %v535, %v533
        %v537 = vsel %vm536, -1e+09, %v527
        %vm538 = vcmask 64512
        %v539 = vsel %vm538, %v537, -inf
        %540 = vmax.xlane.f32.xlu0 %v539
        %v541 = vpop.xlane.xlu0 %540
        %v542 = vsub.f32 %v537, %v541
        %v543 = vmul.f32 %v542, 1.442695
        %v544 = vpow.pop %v543
        %v545 = vsel %vm538, %v544, 0.0
        %546 = vadd.xlane.f32.xlu0 %v545
        %v547 = vpop.xlane.xlu0 %546
        %v548 = vrcp.pop %v547
        %v549 = vmul.f32 %v544, %v548
        %v550 = vpack.c.bf16 %v549, %v549
        %v551 = vpack.c.bf16 %v478, %v478
        %v553 = vsel %vm538, %v550, 0
        %vm555 = vcmask 1043456
        %v557 = vsel %vm555, %v551, 0
        %559 = vmatprep.subr.bf16.mxu0 0
        %560 = vmatpush1.bf16.msra.mxu0 %v557
        %561 = vmatprep.subr.bf16.mxu0 0
        %562 = vmatpush1.bf16.msra.mxu0 0
        %563 = vmatprep.subr.bf16.mxu0 0
        %564 = vmatpush1.bf16.msra.mxu0 0
        %565 = vmatprep.subr.bf16.mxu0 0
        %566 = vmatpush1.bf16.msra.mxu0 0
        %567 = vmatprep.subr.bf16.mxu0 0
        %568 = vmatpush1.bf16.msra.mxu0 0
        %569 = vmatprep.subr.bf16.mxu0 0
        %570 = vmatpush1.bf16.msra.mxu0 0
        %571 = vmatprep.subr.bf16.mxu0 0
        %572 = vmatpush1.bf16.msra.mxu0 0
        %573 = vmatprep.subr.bf16.mxu0 0
        %574 = vmatpush1.bf16.msra.mxu0 0
        %575 = vmatprep.subr.bf16.mxu0 0
        %576 = vmatpush1.bf16.msra.mxu0 0
        %577 = vmatprep.subr.bf16.mxu0 0
        %578 = vmatpush1.bf16.msra.mxu0 0
        %579 = vmatprep.subr.bf16.mxu0 0
        %580 = vmatpush1.bf16.msra.mxu0 0
        %581 = vmatprep.subr.bf16.mxu0 0
        %582 = vmatpush1.bf16.msra.mxu0 0
        %583 = vmatprep.subr.bf16.mxu0 0
        %584 = vmatpush1.bf16.msra.mxu0 0
        %585 = vmatprep.subr.bf16.mxu0 0
        %586 = vmatpush1.bf16.msra.mxu0 0
        %587 = vmatprep.subr.bf16.mxu0 0
        %588 = vmatpush1.bf16.msra.mxu0 0
        %589 = vmatprep.subr.bf16.mxu0 0
        %590 = vmatpush1.bf16.msra.mxu0 0
        %591 = vmatprep.mubr.bf16.mxu0 0
        %592 = vmatmul.mubr.bf16.gmra.mrb[0].mxu0 %v553
        %v593 = vpop.f32.mrb[0].mxu0
        %v594 = vadd.f32 0.0, %v593
        %v595 = vpop.f32.mrb[0].mxu0
        %v596 = vpop.f32.mrb[0].mxu0
        %v597 = vpop.f32.mrb[0].mxu0
        %598 = vdwg.mxu0
        %v599 = vld [vmem:[%s3 + $0xc] sm:$0xf]
        %v600 = vld [vmem:[%s3 + $0x3c] sm:$0xf]
        %v601 = vld [vmem:[%s3 + $0x6c] sm:$0xf]
        %v602 = vld [vmem:[%s3 + $0x9c] sm:$0xf]
        %v603 = vpack.c.bf16 %v594, %v594
        %v604 = vld [vmem:[%s5 + $0x3] sm:$0x1]
        %v606 = vlaneseq
        %v607 = vshrl.u32 %v606, 7
        %v608 = vsub.s32 0, %v607
        %v609 = vrot.slane %v604, %v608
        %v615 = vunpack.c.l.b16 %v599
        %v616 = vunpack.c.l.b16 %v600
        %v617 = vunpack.c.l.b16 %v601
        %v618 = vunpack.c.l.b16 %v602
        %v619 = vpack.c.b16 %v616, %v615
        %v620 = vpack.c.b16 %v618, %v617
        %v624 = vsel %vm316, %v603, 0
        %626 = vmatprep.subr.bf16.mxu0 0
        %627 = vmatpush1.bf16.msra.mxu0 %v619
        %628 = vmatprep.subr.bf16.mxu0 0
        %629 = vmatpush1.bf16.msra.mxu0 %v620
        %630 = vmatprep.subr.bf16.mxu0 0
        %631 = vmatpush1.bf16.msra.mxu0 0
        %632 = vmatprep.subr.bf16.mxu0 0
        %633 = vmatpush1.bf16.msra.mxu0 0
        %634 = vmatprep.subr.bf16.mxu0 0
        %635 = vmatpush1.bf16.msra.mxu0 0
        %636 = vmatprep.subr.bf16.mxu0 0
        %637 = vmatpush1.bf16.msra.mxu0 0
        %638 = vmatprep.subr.bf16.mxu0 0
        %639 = vmatpush1.bf16.msra.mxu0 0
        %640 = vmatprep.subr.bf16.mxu0 0
        %641 = vmatpush1.bf16.msra.mxu0 0
        %642 = vmatprep.subr.bf16.mxu0 0
        %643 = vmatpush1.bf16.msra.mxu0 0
        %644 = vmatprep.subr.bf16.mxu0 0
        %645 = vmatpush1.bf16.msra.mxu0 0
        %646 = vmatprep.subr.bf16.mxu0 0
        %647 = vmatpush1.bf16.msra.mxu0 0
        %648 = vmatprep.subr.bf16.mxu0 0
        %649 = vmatpush1.bf16.msra.mxu0 0
        %650 = vmatprep.subr.bf16.mxu0 0
        %651 = vmatpush1.bf16.msra.mxu0 0
        %652 = vmatprep.subr.bf16.mxu0 0
        %653 = vmatpush1.bf16.msra.mxu0 0
        %654 = vmatprep.subr.bf16.mxu0 0
        %655 = vmatpush1.bf16.msra.mxu0 0
        %656 = vmatprep.subr.bf16.mxu0 0
        %657 = vmatpush1.bf16.msra.mxu0 0
        %658 = vmatprep.mubr.bf16.mxu0 0
        %659 = vmatmul.mubr.bf16.gmra.mrb[0].mxu0 %v624
        %v660 = vpop.f32.mrb[0].mxu0
        %v661 = vadd.f32 %v609, %v660
        %v662 = vpop.f32.mrb[0].mxu0
        %v663 = vpop.f32.mrb[0].mxu0
        %v664 = vpop.f32.mrb[0].mxu0
        %665 = vdwg.mxu0
        %v666 = vadd.f32 %v340, %v661
        %v667 = vsel %vm316, %v666, 0.0
        %668 = vadd.xlane.f32.xlu0 %v667
        %v669 = vpop.xlane.xlu0 %668
        %v670 = vmul.f32 %v669, %v320
        %v671 = vsub.f32 %v666, %v670
        %v672 = vmul.f32 %v671, %v671
        %v673 = vsel %vm316, %v672, 0.0
        %674 = vadd.xlane.f32.xlu0 %v673
        %v675 = vpop.xlane.xlu0 %674
        %v676 = vmul.f32 %v675, %v320
        %v677 = vadd.f32 %v676, 1e-05
        %v678 = vrsqrt.pop %v677
        %v679 = vmul.f32 %v671, %v678
        %v680 = vlaneseq
        %v681 = vshrl.u32 %v680, 7
        %v682 = vsub.s32 1, %v681
        %v683 = vrot.slane %v312, %v682
        %v684 = vmul.f32 %v679, %v683
        %v685 = vlaneseq
        %v686 = vshrl.u32 %v685, 7
        %v687 = vsub.s32 5, %v686
        %v688 = vrot.slane %v312, %v687
        %v689 = vadd.f32 %v684, %v688
        %v690 = vld [vmem:[%s3 + $0x10] sm:$0xf]
        %v691 = vld [vmem:[%s3 + $0x40] sm:$0xf]
        %v692 = vld [vmem:[%s3 + $0x70] sm:$0xf]
        %v693 = vld [vmem:[%s3 + $0xa0] sm:$0xf]
        %v694 = vpack.c.bf16 %v689, %v689
        %v695 = vld [vmem:[%s5 + $0x4] sm:$0x1]
        %v697 = vlaneseq
        %v698 = vshrl.u32 %v697, 7
        %v699 = vsub.s32 0, %v698
        %v700 = vrot.slane %v695, %v699
        %v706 = vunpack.c.l.b16 %v690
        %v707 = vunpack.c.l.b16 %v691
        %v708 = vunpack.c.l.b16 %v692
        %v709 = vunpack.c.l.b16 %v693
        %v710 = vpack.c.b16 %v707, %v706
        %v711 = vpack.c.b16 %v709, %v708
        %v715 = vsel %vm316, %v694, 0
        %717 = vmatprep.subr.bf16.mxu0 0
        %718 = vmatpush1.bf16.msra.mxu0 %v710
        %719 = vmatprep.subr.bf16.mxu0 0
        %720 = vmatpush1.bf16.msra.mxu0 %v711
        %721 = vmatprep.subr.bf16.mxu0 0
        %722 = vmatpush1.bf16.msra.mxu0 0
        %723 = vmatprep.subr.bf16.mxu0 0
        %724 = vmatpush1.bf16.msra.mxu0 0
        %725 = vmatprep.subr.bf16.mxu0 0
        %726 = vmatpush1.bf16.msra.mxu0 0
        %727 = vmatprep.subr.bf16.mxu0 0
        %728 = vmatpush1.bf16.msra.mxu0 0
        %729 = vmatprep.subr.bf16.mxu0 0
        %730 = vmatpush1.bf16.msra.mxu0 0
        %731 = vmatprep.subr.bf16.mxu0 0
        %732 = vmatpush1.bf16.msra.mxu0 0
        %733 = vmatprep.subr.bf16.mxu0 0
        %734 = vmatpush1.bf16.msra.mxu0 0
        %735 = vmatprep.subr.bf16.mxu0 0
        %736 = vmatpush1.bf16.msra.mxu0 0
        %737 = vmatprep.subr.bf16.mxu0 0
        %738 = vmatpush1.bf16.msra.mxu0 0
        %739 = vmatprep.subr.bf16.mxu0 0
        %740 = vmatpush1.bf16.msra.mxu0 0
        %741 = vmatprep.subr.bf16.mxu0 0
        %742 = vmatpush1.bf16.msra.mxu0 0
        %743 = vmatprep.subr.bf16.mxu0 0
        %744 = vmatpush1.bf16.msra.mxu0 0
        %745 = vmatprep.subr.bf16.mxu0 0
        %746 = vmatpush1.bf16.msra.mxu0 0
        %747 = vmatprep.subr.bf16.mxu0 0
        %748 = vmatpush1.bf16.msra.mxu0 0
        %749 = vmatprep.mubr.bf16.mxu0 0
        %750 = vmatmul.mubr.bf16.gmra.mrb[0].mxu0 %v715
        %v751 = vpop.f32.mrb[0].mxu0
        %v752 = vadd.f32 %v700, %v751
        %v753 = vpop.f32.mrb[0].mxu0
        %v754 = vpop.f32.mrb[0].mxu0
        %v755 = vpop.f32.mrb[0].mxu0
        %756 = vdwg.mxu0
        %v757 = vld [vmem:[%s3 + $0x14] sm:$0xff]
        %v758 = vld [vmem:[%s3 + $0x44] sm:$0xff]
        %v759 = vld [vmem:[%s3 + $0x74] sm:$0xff]
        %v760 = vld [vmem:[%s3 + $0xa4] sm:$0xff]
        %v761 = vpack.c.bf16 %v315, %v314
        %v762 = vld [vmem:[%s5 + $0x5] sm:$0x3]
        %v764 = vlaneseq
        %v765 = vshrl.u32 %v764, 7
        %v766 = vsub.s32 0, %v765
        %v767 = vrot.slane %v762, %v766
        %v768 = vlaneseq
        %v769 = vshrl.u32 %v768, 7
        %v770 = vsub.s32 1, %v769
        %v771 = vrot.slane %v762, %v770
        %v778 = vunpack.c.l.b16 %v757
        %v779 = vunpack.c.h.b16 %v757
        %v780 = vunpack.c.l.b16 %v758
        %v781 = vunpack.c.h.b16 %v758
        %v782 = vunpack.c.l.b16 %v759
        %v783 = vunpack.c.h.b16 %v759
        %v784 = vunpack.c.l.b16 %v760
        %v785 = vunpack.c.h.b16 %v760
        %v786 = vpack.c.b16 %v780, %v778
        %v787 = vpack.c.b16 %v781, %v779
        %v788 = vpack.c.b16 %v784, %v782
        %v789 = vpack.c.b16 %v785, %v783
        %v795 = vsel %vm316, %v761, 0
        %797 = vmatprep.subr.bf16.mxu0 %v787
        %798 = vmatpush1.bf16.msra.mxu0 %v786
        %799 = vmatprep.subr.bf16.mxu0 %v789
        %800 = vmatpush1.bf16.msra.mxu0 %v788
        %801 = vmatprep.subr.bf16.mxu0 0
        %802 = vmatpush1.bf16.msra.mxu0 0
        %803 = vmatprep.subr.bf16.mxu0 0
        %804 = vmatpush1.bf16.msra.mxu0 0
        %805 = vmatprep.subr.bf16.mxu0 0
        %806 = vmatpush1.bf16.msra.mxu0 0
        %807 = vmatprep.subr.bf16.mxu0 0
        %808 = vmatpush1.bf16.msra.mxu0 0
        %809 = vmatprep.subr.bf16.mxu0 0
        %810 = vmatpush1.bf16.msra.mxu0 0
        %811 = vmatprep.subr.bf16.mxu0 0
        %812 = vmatpush1.bf16.msra.mxu0 0
        %813 = vmatprep.subr.bf16.mxu0 0
        %814 = vmatpush1.bf16.msra.mxu0 0
        %815 = vmatprep.subr.bf16.mxu0 0
        %816 = vmatpush1.bf16.msra.mxu0 0
        %817 = vmatprep.subr.bf16.mxu0 0
        %818 = vmatpush1.bf16.msra.mxu0 0
        %819 = vmatprep.subr.bf16.mxu0 0
        %820 = vmatpush1.bf16.msra.mxu0 0
        %821 = vmatprep.subr.bf16.mxu0 0
        %822 = vmatpush1.bf16.msra.mxu0 0
        %823 = vmatprep.subr.bf16.mxu0 0
        %824 = vmatpush1.bf16.msra.mxu0 0
        %825 = vmatprep.subr.bf16.mxu0 0
        %826 = vmatpush1.bf16.msra.mxu0 0
        %827 = vmatprep.subr.bf16.mxu0 0
        %828 = vmatpush1.bf16.msra.mxu0 0
        %829 = vmatprep.mubr.bf16.mxu0 0
        %830 = vmatmul.mubr.bf16.gmra.mrb[0].mxu0 %v795
        %v831 = vpop.f32.mrb[0].mxu0
        %v832 = vadd.f32 %v767, %v831
        %v833 = vpop.f32.mrb[0].mxu0
        %v834 = vadd.f32 %v771, %v833
        %v835 = vpop.f32.mrb[0].mxu0
        %v836 = vadd.f32 %v767, %v835
        %v837 = vpop.f32.mrb[0].mxu0
        %v838 = vadd.f32 %v771, %v837
        %839 = vdwg.mxu0
        %v840 = vmul.f32 %v752, 0.17677669
        %v841 = vpack.c.bf16 %v840, %v840
        %v842 = vpack.c.bf16 %v836, %v832
        %v843 = vld [vmem:[%s310] sm:$0x1]
        %v844 = vlaneseq
        %v845 = vshrl.u32 %v844, 7
        %v846 = vsub.s32 0, %v845
        %v847 = vrot.slane %v843, %v846
        %v849 = vsel %vm316, %v841, 0
        %v852 = vsel %vm316, %v842, 0
        %854 = vmatprep.subr.bf16.mxu0 0
        %855 = vmatpush1.bf16.xpose.msra.mxu0 %v852
        %856 = vmatprep.subr.bf16.mxu0 0
        %857 = vmatpush1.bf16.xpose.msra.mxu0 0
        %858 = vmatprep.subr.bf16.mxu0 0
        %859 = vmatpush1.bf16.xpose.msra.mxu0 0
        %860 = vmatprep.subr.bf16.mxu0 0
        %861 = vmatpush1.bf16.xpose.msra.mxu0 0
        %862 = vmatprep.subr.bf16.mxu0 0
        %863 = vmatpush1.bf16.xpose.msra.mxu0 0
        %864 = vmatprep.subr.bf16.mxu0 0
        %865 = vmatpush1.bf16.xpose.msra.mxu0 0
        %866 = vmatprep.subr.bf16.mxu0 0
        %867 = vmatpush1.bf16.xpose.msra.mxu0 0
        %868 = vmatprep.subr.bf16.mxu0 0
        %869 = vmatpush1.bf16.xpose.msra.mxu0 0
        %870 = vmatprep.subr.bf16.mxu0 0
        %871 = vmatpush1.bf16.xpose.msra.mxu0 0
        %872 = vmatprep.subr.bf16.mxu0 0
        %873 = vmatpush1.bf16.xpose.msra.mxu0 0
        %874 = vmatprep.subr.bf16.mxu0 0
        %875 = vmatpush1.bf16.xpose.msra.mxu0 0
        %876 = vmatprep.subr.bf16.mxu0 0
        %877 = vmatpush1.bf16.xpose.msra.mxu0 0
        %878 = vmatprep.subr.bf16.mxu0 0
        %879 = vmatpush1.bf16.xpose.msra.mxu0 0
        %880 = vmatprep.subr.bf16.mxu0 0
        %881 = vmatpush1.bf16.xpose.msra.mxu0 0
        %882 = vmatprep.subr.bf16.mxu0 0
        %883 = vmatpush1.bf16.xpose.msra.mxu0 0
        %884 = vmatprep.subr.bf16.mxu0 0
        %885 = vmatpush1.bf16.xpose.msra.mxu0 0
        %886 = vmatprep.mubr.bf16.mxu0 0
        %887 = vmatmul.mubr.bf16.gmra.mrb[0].mxu0 %v849
        %v888 = vpop.f32.mrb[0].mxu0
        %v889 = vadd.f32 %v847, %v888
        %v890 = vpop.f32.mrb[0].mxu0
        %v891 = vpop.f32.mrb[0].mxu0
        %v892 = vpop.f32.mrb[0].mxu0
        %893 = vdwg.mxu0
        %vm894 = vcmask 130048
        %v895 = vsel %vm894, %v889, -inf
        %896 = vmax.xlane.f32.xlu0 %v895
        %v897 = vpop.xlane.xlu0 %896
        %v898 = vsub.f32 %v889, %v897
        %v899 = vmul.f32 %v898, 1.442695
        %v900 = vpow.pop %v899
        %v901 = vsel %vm894, %v900, 0.0
        %902 = vadd.xlane.f32.xlu0 %v901
        %v903 = vpop.xlane.xlu0 %902
        %v904 = vrcp.pop %v903
        %v905 = vmul.f32 %v900, %v904
        %v906 = vpack.c.bf16 %v905, %v905
        %v907 = vpack.c.bf16 %v838, %v834
        %v909 = vsel %vm894, %v906, 0
        %911 = vmatprep.subr.bf16.mxu0 0
        %912 = vmatpush1.bf16.msra.mxu0 %v907
        %913 = vmatprep.subr.bf16.mxu0 0
        %914 = vmatpush1.bf16.msra.mxu0 0
        %915 = vmatprep.subr.bf16.mxu0 0
        %916 = vmatpush1.bf16.msra.mxu0 0
        %917 = vmatprep.subr.bf16.mxu0 0
        %918 = vmatpush1.bf16.msra.mxu0 0
        %919 = vmatprep.subr.bf16.mxu0 0
        %920 = vmatpush1.bf16.msra.mxu0 0
        %921 = vmatprep.subr.bf16.mxu0 0
        %922 = vmatpush1.bf16.msra.mxu0 0
        %923 = vmatprep.subr.bf16.mxu0 0
        %924 = vmatpush1.bf16.msra.mxu0 0
        %925 = vmatprep.subr.bf16.mxu0 0
        %926 = vmatpush1.bf16.msra.mxu0 0
        %927 = vmatprep.subr.bf16.mxu0 0
        %928 = vmatpush1.bf16.msra.mxu0 0
        %929 = vmatprep.subr.bf16.mxu0 0
        %930 = vmatpush1.bf16.msra.mxu0 0
        %931 = vmatprep.subr.bf16.mxu0 0
        %932 = vmatpush1.bf16.msra.mxu0 0
        %933 = vmatprep.subr.bf16.mxu0 0
        %934 = vmatpush1.bf16.msra.mxu0 0
        %935 = vmatprep.subr.bf16.mxu0 0
        %936 = vmatpush1.bf16.msra.mxu0 0
        %937 = vmatprep.subr.bf16.mxu0 0
        %938 = vmatpush1.bf16.msra.mxu0 0
        %939 = vmatprep.subr.bf16.mxu0 0
        %940 = vmatpush1.bf16.msra.mxu0 0
        %941 = vmatprep.subr.bf16.mxu0 0
        %942 = vmatpush1.bf16.msra.mxu0 0
        %943 = vmatprep.mubr.bf16.mxu0 0
        %944 = vmatmul.mubr.bf16.gmra.mrb[0].mxu0 %v909
        %v945 = vpop.f32.mrb[0].mxu0
        %v946 = vadd.f32 0.0, %v945
        %v947 = vpop.f32.mrb[0].mxu0
        %v948 = vpop.f32.mrb[0].mxu0
        %v949 = vpop.f32.mrb[0].mxu0
        %950 = vdwg.mxu0
        %v951 = vld [vmem:[%s3 + $0x1c] sm:$0xf]
        %v952 = vld [vmem:[%s3 + $0x4c] sm:$0xf]
        %v953 = vld [vmem:[%s3 + $0x7c] sm:$0xf]
        %v954 = vld [vmem:[%s3 + $0xac] sm:$0xf]
        %v955 = vpack.c.bf16 %v946, %v946
        %v956 = vld [vmem:[%s5 + $0x7] sm:$0x1]
        %v958 = vlaneseq
        %v959 = vshrl.u32 %v958, 7
        %v960 = vsub.s32 0, %v959
        %v961 = vrot.slane %v956, %v960
        %v967 = vunpack.c.l.b16 %v951
        %v968 = vunpack.c.l.b16 %v952
        %v969 = vunpack.c.l.b16 %v953
        %v970 = vunpack.c.l.b16 %v954
        %v971 = vpack.c.b16 %v968, %v967
        %v972 = vpack.c.b16 %v970, %v969
        %v976 = vsel %vm316, %v955, 0
        %978 = vmatprep.subr.bf16.mxu0 0
        %979 = vmatpush1.bf16.msra.mxu0 %v971
        %980 = vmatprep.subr.bf16.mxu0 0
        %981 = vmatpush1.bf16.msra.mxu0 %v972
        %982 = vmatprep.subr.bf16.mxu0 0
        %983 = vmatpush1.bf16.msra.mxu0 0
        %984 = vmatprep.subr.bf16.mxu0 0
        %985 = vmatpush1.bf16.msra.mxu0 0
        %986 = vmatprep.subr.bf16.mxu0 0
        %987 = vmatpush1.bf16.msra.mxu0 0
        %988 = vmatprep.subr.bf16.mxu0 0
        %989 = vmatpush1.bf16.msra.mxu0 0
        %990 = vmatprep.subr.bf16.mxu0 0
        %991 = vmatpush1.bf16.msra.mxu0 0
        %992 = vmatprep.subr.bf16.mxu0 0
        %993 = vmatpush1.bf16.msra.mxu0 0
        %994 = vmatprep.subr.bf16.mxu0 0
        %995 = vmatpush1.bf16.msra.mxu0 0
        %996 = vmatprep.subr.bf16.mxu0 0
        %997 = vmatpush1.bf16.msra.mxu0 0
        %998 = vmatprep.subr.bf16.mxu0 0
        %999 = vmatpush1.bf16.msra.mxu0 0
        %1000 = vmatprep.subr.bf16.mxu0 0
        %1001 = vmatpush1.bf16.msra.mxu0 0
        %1002 = vmatprep.subr.bf16.mxu0 0
        %1003 = vmatpush1.bf16.msra.mxu0 0
        %1004 = vmatprep.subr.bf16.mxu0 0
        %1005 = vmatpush1.bf16.msra.mxu0 0
        %1006 = vmatprep.subr.bf16.mxu0 0
        %1007 = vmatpush1.bf16.msra.mxu0 0
        %1008 = vmatprep.subr.bf16.mxu0 0
        %1009 = vmatpush1.bf16.msra.mxu0 0
        %1010 = vmatprep.mubr.bf16.mxu0 0
        %1011 = vmatmul.mubr.bf16.gmra.mrb[0].mxu0 %v976
        %v1012 = vpop.f32.mrb[0].mxu0
        %v1013 = vadd.f32 %v961, %v1012
        %v1014 = vpop.f32.mrb[0].mxu0
        %v1015 = vpop.f32.mrb[0].mxu0
        %v1016 = vpop.f32.mrb[0].mxu0
        %1017 = vdwg.mxu0
        %v1018 = vadd.f32 %v689, %v1013
        %v1019 = vsel %vm316, %v1018, 0.0
        %1020 = vadd.xlane.f32.xlu0 %v1019
        %v1021 = vpop.xlane.xlu0 %1020
        %v1022 = vmul.f32 %v1021, %v320
        %v1023 = vsub.f32 %v1018, %v1022
        %v1024 = vmul.f32 %v1023, %v1023
        %v1025 = vsel %vm316, %v1024, 0.0
        %1026 = vadd.xlane.f32.xlu0 %v1025
        %v1027 = vpop.xlane.xlu0 %1026
        %v1028 = vmul.f32 %v1027, %v320
        %v1029 = vadd.f32 %v1028, 1e-05
        %v1030 = vrsqrt.pop %v1029
        %v1031 = vmul.f32 %v1023, %v1030
        %v1032 = vlaneseq
        %v1033 = vshrl.u32 %v1032, 7
        %v1034 = vsub.s32 2, %v1033
        %v1035 = vrot.slane %v312, %v1034
        %v1036 = vmul.f32 %v1031, %v1035
        %v1037 = vlaneseq
        %v1038 = vshrl.u32 %v1037, 7
        %v1039 = vsub.s32 6, %v1038
        %v1040 = vrot.slane %v312, %v1039
        %v1041 = vadd.f32 %v1036, %v1040
        %v1042 = vld [vmem:[%s3 + $0x20] sm:$0xf]
        %v1043 = vld [vmem:[%s3 + $0x50] sm:$0xf]
        %v1044 = vld [vmem:[%s3 + $0x80] sm:$0xf]
        %v1045 = vld [vmem:[%s3 + $0xb0] sm:$0xf]
        %v1046 = vpack.c.bf16 %v1041, %v1041
        %v1047 = vld [vmem:[%s5 + $0x8] sm:$0x1]
        %v1049 = vlaneseq
        %v1050 = vshrl.u32 %v1049, 7
        %v1051 = vsub.s32 0, %v1050
        %v1052 = vrot.slane %v1047, %v1051
        %v1058 = vunpack.c.l.b16 %v1042
        %v1059 = vunpack.c.l.b16 %v1043
        %v1060 = vunpack.c.l.b16 %v1044
        %v1061 = vunpack.c.l.b16 %v1045
        %v1062 = vpack.c.b16 %v1059, %v1058
        %v1063 = vpack.c.b16 %v1061, %v1060
        %v1067 = vsel %vm316, %v1046, 0
        %1069 = vmatprep.subr.bf16.mxu0 0
        %1070 = vmatpush1.bf16.msra.mxu0 %v1062
        %1071 = vmatprep.subr.bf16.mxu0 0
        %1072 = vmatpush1.bf16.msra.mxu0 %v1063
        %1073 = vmatprep.subr.bf16.mxu0 0
        %1074 = vmatpush1.bf16.msra.mxu0 0
        %1075 = vmatprep.subr.bf16.mxu0 0
        %1076 = vmatpush1.bf16.msra.mxu0 0
        %1077 = vmatprep.subr.bf16.mxu0 0
        %1078 = vmatpush1.bf16.msra.mxu0 0
        %1079 = vmatprep.subr.bf16.mxu0 0
        %1080 = vmatpush1.bf16.msra.mxu0 0
        %1081 = vmatprep.subr.bf16.mxu0 0
        %1082 = vmatpush1.bf16.msra.mxu0 0
        %1083 = vmatprep.subr.bf16.mxu0 0
        %1084 = vmatpush1.bf16.msra.mxu0 0
        %1085 = vmatprep.subr.bf16.mxu0 0
        %1086 = vmatpush1.bf16.msra.mxu0 0
        %1087 = vmatprep.subr.bf16.mxu0 0
        %1088 = vmatpush1.bf16.msra.mxu0 0
        %1089 = vmatprep.subr.bf16.mxu0 0
        %1090 = vmatpush1.bf16.msra.mxu0 0
        %1091 = vmatprep.subr.bf16.mxu0 0
        %1092 = vmatpush1.bf16.msra.mxu0 0
        %1093 = vmatprep.subr.bf16.mxu0 0
        %1094 = vmatpush1.bf16.msra.mxu0 0
        %1095 = vmatprep.subr.bf16.mxu0 0
        %1096 = vmatpush1.bf16.msra.mxu0 0
        %1097 = vmatprep.subr.bf16.mxu0 0
        %1098 = vmatpush1.bf16.msra.mxu0 0
        %1099 = vmatprep.subr.bf16.mxu0 0
        %1100 = vmatpush1.bf16.msra.mxu0 0
        %1101 = vmatprep.mubr.bf16.mxu0 0
        %1102 = vmatmul.mubr.bf16.gmra.mrb[0].mxu0 %v1067
        %v1103 = vpop.f32.mrb[0].mxu0
        %v1104 = vadd.f32 %v1052, %v1103
        %v1105 = vpop.f32.mrb[0].mxu0
        %v1106 = vpop.f32.mrb[0].mxu0
        %v1107 = vpop.f32.mrb[0].mxu0
        %1108 = vdwg.mxu0
        %v1109 = vmax.f32 %v1104, 0.0
        %v1110 = vld [vmem:[%s4] sm:$0xf]
        %v1111 = vld [vmem:[%s4 + $0x4] sm:$0xf]
        %v1112 = vld [vmem:[%s4 + $0x8] sm:$0xf]
        %v1113 = vld [vmem:[%s4 + $0xc] sm:$0xf]
        %v1114 = vld [vmem:[%s4 + $0x10] sm:$0xf]
        %v1115 = vld [vmem:[%s4 + $0x14] sm:$0xf]
        %v1116 = vld [vmem:[%s4 + $0x18] sm:$0xf]
        %v1117 = vld [vmem:[%s4 + $0x1c] sm:$0xf]
        %v1118 = vpack.c.bf16 %v1109, %v1109
        %v1119 = vld [vmem:[%s5 + $0xb] sm:$0x1]
        %v1121 = vlaneseq
        %v1122 = vshrl.u32 %v1121, 7
        %v1123 = vsub.s32 0, %v1122
        %v1124 = vrot.slane %v1119, %v1123
        %v1134 = vunpack.c.l.b16 %v1110
        %v1135 = vunpack.c.l.b16 %v1111
        %v1136 = vunpack.c.l.b16 %v1112
        %v1137 = vunpack.c.l.b16 %v1113
        %v1138 = vunpack.c.l.b16 %v1114
        %v1139 = vunpack.c.l.b16 %v1115
        %v1140 = vunpack.c.l.b16 %v1116
        %v1141 = vunpack.c.l.b16 %v1117
        %v1142 = vpack.c.b16 %v1135, %v1134
        %v1143 = vpack.c.b16 %v1137, %v1136
        %v1144 = vpack.c.b16 %v1139, %v1138
        %v1145 = vpack.c.b16 %v1141, %v1140
        %vm1150 = vcmask 523264
        %v1152 = vsel %vm1150, %v1118, 0
        %1154 = vmatprep.subr.bf16.mxu0 0
        %1155 = vmatpush1.bf16.msra.mxu0 %v1142
        %1156 = vmatprep.subr.bf16.mxu0 0
        %1157 = vmatpush1.bf16.msra.mxu0 %v1143
        %1158 = vmatprep.subr.bf16.mxu0 0
        %1159 = vmatpush1.bf16.msra.mxu0 %v1144
        %1160 = vmatprep.subr.bf16.mxu0 0
        %1161 = vmatpush1.bf16.msra.mxu0 %v1145
        %1162 = vmatprep.subr.bf16.mxu0 0
        %1163 = vmatpush1.bf16.msra.mxu0 0
        %1164 = vmatprep.subr.bf16.mxu0 0
        %1165 = vmatpush1.bf16.msra.mxu0 0
        %1166 = vmatprep.subr.bf16.mxu0 0
        %1167 = vmatpush1.bf16.msra.mxu0 0
        %1168 = vmatprep.subr.bf16.mxu0 0
        %1169 = vmatpush1.bf16.msra.mxu0 0
        %1170 = vmatprep.subr.bf16.mxu0 0
        %1171 = vmatpush1.bf16.msra.mxu0 0
        %1172 = vmatprep.subr.bf16.mxu0 0
        %1173 = vmatpush1.bf16.msra.mxu0 0
        %1174 = vmatprep.subr.bf16.mxu0 0
        %1175 = vmatpush1.bf16.msra.mxu0 0
        %1176 = vmatprep.subr.bf16.mxu0 0
        %1177 = vmatpush1.bf16.msra.mxu0 0
        %1178 = vmatprep.subr.bf16.mxu0 0
        %1179 = vmatpush1.bf16.msra.mxu0 0
        %1180 = vmatprep.subr.bf16.mxu0 0
        %1181 = vmatpush1.bf16.msra.mxu0 0
        %1182 = vmatprep.subr.bf16.mxu0 0
        %1183 = vmatpush1.bf16.msra.mxu0 0
        %1184 = vmatprep.subr.bf16.mxu0 0
        %1185 = vmatpush1.bf16.msra.mxu0 0
        %1186 = vmatprep.mubr.bf16.mxu0 0
        %1187 = vmatmul.mubr.bf16.gmra.mrb[0].mxu0 %v1152
        %v1188 = vpop.f32.mrb[0].mxu0
        %v1189 = vadd.f32 %v1124, %v1188
        %v1190 = vpop.f32.mrb[0].mxu0
        %v1191 = vpop.f32.mrb[0].mxu0
        %v1192 = vpop.f32.mrb[0].mxu0
        %1193 = vdwg.mxu0
        %v1194 = vadd.f32 %v1041, %v1189
        %v1195 = vsel %vm316, %v1194, 0.0
        %1196 = vadd.xlane.f32.xlu0 %v1195
        %v1197 = vpop.xlane.xlu0 %1196
        %v1198 = vmul.f32 %v1197, %v320
        %v1199 = vsub.f32 %v1194, %v1198
        %v1200 = vmul.f32 %v1199, %v1199
        %v1201 = vsel %vm316, %v1200, 0.0
        %1202 = vadd.xlane.f32.xlu0 %v1201
        %v1203 = vpop.xlane.xlu0 %1202
        %v1204 = vmul.f32 %v1203, %v320
        %v1205 = vadd.f32 %v1204, 1e-05
        %v1206 = vrsqrt.pop %v1205
        %v1207 = vmul.f32 %v1199, %v1206
        %v1208 = vlaneseq
        %v1209 = vshrl.u32 %v1208, 7
        %v1210 = vsub.s32 3, %v1209
        %v1211 = vrot.slane %v312, %v1210
        %v1212 = vmul.f32 %v1207, %v1211
        %v1213 = vlaneseq
        %v1214 = vshrl.u32 %v1213, 7
        %v1215 = vsub.s32 7, %v1214
        %v1216 = vrot.slane %v312, %v1215
        %v1217 = vadd.f32 %v1212, %v1216
        %v1218 = vld [vmem:[%s3 + $0x24] sm:$0xf]
        %v1219 = vld [vmem:[%s3 + $0x54] sm:$0xf]
        %v1220 = vld [vmem:[%s3 + $0x84] sm:$0xf]
        %v1221 = vld [vmem:[%s3 + $0xb4] sm:$0xf]
        %v1222 = vld [vmem:[%s5 + $0x9] sm:$0x1]
        %v1224 = vlaneseq
        %v1225 = vshrl.u32 %v1224, 7
        %v1226 = vsub.s32 0, %v1225
        %v1227 = vrot.slane %v1222, %v1226
        %v1233 = vunpack.c.l.b16 %v1218
        %v1234 = vunpack.c.l.b16 %v1219
        %v1235 = vunpack.c.l.b16 %v1220
        %v1236 = vunpack.c.l.b16 %v1221
        %v1237 = vpack.c.b16 %v1234, %v1233
        %v1238 = vpack.c.b16 %v1236, %v1235
        %1241 = vmatprep.subr.bf16.mxu0 0
        %1242 = vmatpush1.bf16.msra.mxu0 %v1237
        %1243 = vmatprep.subr.bf16.mxu0 0
        %1244 = vmatpush1.bf16.msra.mxu0 %v1238
        %1245 = vmatprep.subr.bf16.mxu0 0
        %1246 = vmatpush1.bf16.msra.mxu0 0
        %1247 = vmatprep.subr.bf16.mxu0 0
        %1248 = vmatpush1.bf16.msra.mxu0 0
        %1249 = vmatprep.subr.bf16.mxu0 0
        %1250 = vmatpush1.bf16.msra.mxu0 0
        %1251 = vmatprep.subr.bf16.mxu0 0
        %1252 = vmatpush1.bf16.msra.mxu0 0
        %1253 = vmatprep.subr.bf16.mxu0 0
        %1254 = vmatpush1.bf16.msra.mxu0 0
        %1255 = vmatprep.subr.bf16.mxu0 0
        %1256 = vmatpush1.bf16.msra.mxu0 0
        %1257 = vmatprep.subr.bf16.mxu0 0
        %1258 = vmatpush1.bf16.msra.mxu0 0
        %1259 = vmatprep.subr.bf16.mxu0 0
        %1260 = vmatpush1.bf16.msra.mxu0 0
        %1261 = vmatprep.subr.bf16.mxu0 0
        %1262 = vmatpush1.bf16.msra.mxu0 0
        %1263 = vmatprep.subr.bf16.mxu0 0
        %1264 = vmatpush1.bf16.msra.mxu0 0
        %1265 = vmatprep.subr.bf16.mxu0 0
        %1266 = vmatpush1.bf16.msra.mxu0 0
        %1267 = vmatprep.subr.bf16.mxu0 0
        %1268 = vmatpush1.bf16.msra.mxu0 0
        %1269 = vmatprep.subr.bf16.mxu0 0
        %1270 = vmatpush1.bf16.msra.mxu0 0
        %1271 = vmatprep.subr.bf16.mxu0 0
        %1272 = vmatpush1.bf16.msra.mxu0 0
        %1273 = vmatprep.mubr.bf16.mxu0 0
        %1274 = vmatmul.mubr.bf16.gmra.mrb[0].mxu0 %v795
        %v1275 = vpop.f32.mrb[0].mxu0
        %v1276 = vadd.f32 %v1227, %v1275
        %v1277 = vpop.f32.mrb[0].mxu0
        %v1278 = vpop.f32.mrb[0].mxu0
        %v1279 = vadd.f32 %v1227, %v1278
        %v1280 = vpop.f32.mrb[0].mxu0
        %1281 = vdwg.mxu0
        %v1282 = vmax.f32 %v1276, 0.0
        %v1283 = vmax.f32 %v1279, 0.0
        %v1284 = vld [vmem:[%s3 + $0x28] sm:$0xf]
        %v1285 = vld [vmem:[%s3 + $0x58] sm:$0xf]
        %v1286 = vld [vmem:[%s3 + $0x88] sm:$0xf]
        %v1287 = vld [vmem:[%s3 + $0xb8] sm:$0xf]
        %v1288 = vpack.c.bf16 %v1283, %v1282
        %v1289 = vld [vmem:[%s5 + $0xa] sm:$0x1]
        %v1291 = vlaneseq
        %v1292 = vshrl.u32 %v1291, 7
        %v1293 = vsub.s32 0, %v1292
        %v1294 = vrot.slane %v1289, %v1293
        %v1300 = vunpack.c.l.b16 %v1284
        %v1301 = vunpack.c.l.b16 %v1285
        %v1302 = vunpack.c.l.b16 %v1286
        %v1303 = vunpack.c.l.b16 %v1287
        %v1304 = vpack.c.b16 %v1301, %v1300
        %v1305 = vpack.c.b16 %v1303, %v1302
        %v1309 = vsel %vm316, %v1288, 0
        %1311 = vmatprep.subr.bf16.mxu0 0
        %1312 = vmatpush1.bf16.msra.mxu0 %v1304
        %1313 = vmatprep.subr.bf16.mxu0 0
        %1314 = vmatpush1.bf16.msra.mxu0 %v1305
        %1315 = vmatprep.subr.bf16.mxu0 0
        %1316 = vmatpush1.bf16.msra.mxu0 0
        %1317 = vmatprep.subr.bf16.mxu0 0
        %1318 = vmatpush1.bf16.msra.mxu0 0
        %1319 = vmatprep.subr.bf16.mxu0 0
        %1320 = vmatpush1.bf16.msra.mxu0 0
        %1321 = vmatprep.subr.bf16.mxu0 0
        %1322 = vmatpush1.bf16.msra.mxu0 0
        %1323 = vmatprep.subr.bf16.mxu0 0
        %1324 = vmatpush1.bf16.msra.mxu0 0
        %1325 = vmatprep.subr.bf16.mxu0 0
        %1326 = vmatpush1.bf16.msra.mxu0 0
        %1327 = vmatprep.subr.bf16.mxu0 0
        %1328 = vmatpush1.bf16.msra.mxu0 0
        %1329 = vmatprep.subr.bf16.mxu0 0
        %1330 = vmatpush1.bf16.msra.mxu0 0
        %1331 = vmatprep.subr.bf16.mxu0 0
        %1332 = vmatpush1.bf16.msra.mxu0 0
        %1333 = vmatprep.subr.bf16.mxu0 0
        %1334 = vmatpush1.bf16.msra.mxu0 0
        %1335 = vmatprep.subr.bf16.mxu0 0
        %1336 = vmatpush1.bf16.msra.mxu0 0
        %1337 = vmatprep.subr.bf16.mxu0 0
        %1338 = vmatpush1.bf16.msra.mxu0 0
        %1339 = vmatprep.subr.bf16.mxu0 0
        %1340 = vmatpush1.bf16.msra.mxu0 0
        %1341 = vmatprep.subr.bf16.mxu0 0
        %1342 = vmatpush1.bf16.msra.mxu0 0
        %1343 = vmatprep.mubr.bf16.mxu0 0
        %1344 = vmatmul.mubr.bf16.gmra.mrb[0].mxu0 %v1309
        %v1345 = vpop.f32.mrb[0].mxu0
        %v1346 = vadd.f32 %v1294, %v1345
        %v1347 = vpop.f32.mrb[0].mxu0
        %v1348 = vpop.f32.mrb[0].mxu0
        %v1349 = vadd.f32 %v1294, %v1348
        %v1350 = vpop.f32.mrb[0].mxu0
        %1351 = vdwg.mxu0
        %v1352 = vld [vmem:[%s3 + $0x2c] sm:$0xf]
        %v1353 = vld [vmem:[%s3 + $0x5c] sm:$0xf]
        %v1354 = vld [vmem:[%s3 + $0x8c] sm:$0xf]
        %v1355 = vld [vmem:[%s3 + $0xbc] sm:$0xf]
        %v1356 = vpack.c.bf16 %v1217, %v1217
        %v1357 = vpack.c.bf16 %v1349, %v1346
        %v1359 = vsel %vm316, %v1356, 0
        %v1362 = vsel %vm316, %v1357, 0
        %1364 = vmatprep.subr.bf16.mxu0 0
        %1365 = vmatpush1.bf16.xpose.msra.mxu0 %v1362
        %1366 = vmatprep.subr.bf16.mxu0 0
        %1367 = vmatpush1.bf16.xpose.msra.mxu0 0
        %1368 = vmatprep.subr.bf16.mxu0 0
        %1369 = vmatpush1.bf16.xpose.msra.mxu0 0
        %1370 = vmatprep.subr.bf16.mxu0 0
        %1371 = vmatpush1.bf16.xpose.msra.mxu0 0
        %1372 = vmatprep.subr.bf16.mxu0 0
        %1373 = vmatpush1.bf16.xpose.msra.mxu0 0
        %1374 = vmatprep.subr.bf16.mxu0 0
        %1375 = vmatpush1.bf16.xpose.msra.mxu0 0
        %1376 = vmatprep.subr.bf16.mxu0 0
        %1377 = vmatpush1.bf16.xpose.msra.mxu0 0
        %1378 = vmatprep.subr.bf16.mxu0 0
        %1379 = vmatpush1.bf16.xpose.msra.mxu0 0
        %1380 = vmatprep.subr.bf16.mxu0 0
        %1381 = vmatpush1.bf16.xpose.msra.mxu0 0
        %1382 = vmatprep.subr.bf16.mxu0 0
        %1383 = vmatpush1.bf16.xpose.msra.mxu0 0
        %1384 = vmatprep.subr.bf16.mxu0 0
        %1385 = vmatpush1.bf16.xpose.msra.mxu0 0
        %1386 = vmatprep.subr.bf16.mxu0 0
        %1387 = vmatpush1.bf16.xpose.msra.mxu0 0
        %1388 = vmatprep.subr.bf16.mxu0 0
        %1389 = vmatpush1.bf16.xpose.msra.mxu0 0
        %1390 = vmatprep.subr.bf16.mxu0 0
        %1391 = vmatpush1.bf16.xpose.msra.mxu0 0
        %1392 = vmatprep.subr.bf16.mxu0 0
        %1393 = vmatpush1.bf16.xpose.msra.mxu0 0
        %1394 = vmatprep.subr.bf16.mxu0 0
        %1395 = vmatpush1.bf16.xpose.msra.mxu0 0
        %1396 = vmatprep.mubr.bf16.mxu0 0
        %1397 = vmatmul.mubr.bf16.gmra.mrb[0].mxu0 %v1359
        %v1398 = vpop.f32.mrb[0].mxu0
        %v1399 = vadd.f32 0.0, %v1398
        %v1400 = vpop.f32.mrb[0].mxu0
        %v1401 = vpop.f32.mrb[0].mxu0
        %v1402 = vpop.f32.mrb[0].mxu0
        %1403 = vdwg.mxu0
        %v1404 = vadd.s32 %v533, 8
        %v1405 = vadd.s32 %v533, 5
        %v1406 = vadd.s32 %v1404, 5
        %vm1407 = vcmp.eq.s32.totalorder %v535, %v1405
        %vm1408 = vcmp.eq.s32.totalorder %v535, %v1406
        %v1409 = vpack.c.bf16 %v1399, %v1399
        %v1410 = vsel %vm1407, 1, 0
        %v1411 = vsel %vm1408, 1, 0
        %v1412 = vcvt.s32.f32 %v1410
        %v1413 = vcvt.s32.f32 %v1411
        %v1414 = vpack.c.bf16 %v1413, %v1412
        %v1416 = vsel %vm894, %v1409, 0
        %1418 = vmatprep.subr.bf16.mxu0 0
        %1419 = vmatpush1.bf16.msra.mxu0 %v1414
        %1420 = vmatprep.subr.bf16.mxu0 0
        %1421 = vmatpush1.bf16.msra.mxu0 0
        %1422 = vmatprep.subr.bf16.mxu0 0
        %1423 = vmatpush1.bf16.msra.mxu0 0
        %1424 = vmatprep.subr.bf16.mxu0 0
        %1425 = vmatpush1.bf16.msra.mxu0 0
        %1426 = vmatprep.subr.bf16.mxu0 0
        %1427 = vmatpush1.bf16.msra.mxu0 0
        %1428 = vmatprep.subr.bf16.mxu0 0
        %1429 = vmatpush1.bf16.msra.mxu0 0
        %1430 = vmatprep.subr.bf16.mxu0 0
        %1431 = vmatpush1.bf16.msra.mxu0 0
        %1432 = vmatprep.subr.bf16.mxu0 0
        %1433 = vmatpush1.bf16.msra.mxu0 0
        %1434 = vmatprep.subr.bf16.mxu0 0
        %1435 = vmatpush1.bf16.msra.mxu0 0
        %1436 = vmatprep.subr.bf16.mxu0 0
        %1437 = vmatpush1.bf16.msra.mxu0 0
        %1438 = vmatprep.subr.bf16.mxu0 0
        %1439 = vmatpush1.bf16.msra.mxu0 0
        %1440 = vmatprep.subr.bf16.mxu0 0
        %1441 = vmatpush1.bf16.msra.mxu0 0
        %1442 = vmatprep.subr.bf16.mxu0 0
        %1443 = vmatpush1.bf16.msra.mxu0 0
        %1444 = vmatprep.subr.bf16.mxu0 0
        %1445 = vmatpush1.bf16.msra.mxu0 0
        %1446 = vmatprep.subr.bf16.mxu0 0
        %1447 = vmatpush1.bf16.msra.mxu0 0
        %1448 = vmatprep.subr.bf16.mxu0 0
        %1449 = vmatpush1.bf16.msra.mxu0 0
        %1450 = vmatprep.mubr.bf16.mxu0 0
        %1451 = vmatmul.mubr.bf16.gmra.mrb[0].mxu0 %v1416
        %v1452 = vpop.f32.mrb[0].mxu0
        %v1453 = vadd.f32 0.0, %v1452
        %v1454 = vpop.f32.mrb[0].mxu0
        %v1455 = vpop.f32.mrb[0].mxu0
        %v1456 = vpop.f32.mrb[0].mxu0
        %1457 = vdwg.mxu0
        %v1458 = vld [vmem:[%s310 + $0x1] sm:$0x1]
        %v1459 = vpack.c.bf16 %v1458, %v1458
        %v1461 = vsel %vm894, %v1459, 0
        %1463 = vmatprep.subr.bf16.mxu0 0
        %1464 = vmatpush1.bf16.msra.mxu0 %v1414
        %1465 = vmatprep.subr.bf16.mxu0 0
        %1466 = vmatpush1.bf16.msra.mxu0 0
        %1467 = vmatprep.subr.bf16.mxu0 0
        %1468 = vmatpush1.bf16.msra.mxu0 0
        %1469 = vmatprep.subr.bf16.mxu0 0
        %1470 = vmatpush1.bf16.msra.mxu0 0
        %1471 = vmatprep.subr.bf16.mxu0 0
        %1472 = vmatpush1.bf16.msra.mxu0 0
        %1473 = vmatprep.subr.bf16.mxu0 0
        %1474 = vmatpush1.bf16.msra.mxu0 0
        %1475 = vmatprep.subr.bf16.mxu0 0
        %1476 = vmatpush1.bf16.msra.mxu0 0
        %1477 = vmatprep.subr.bf16.mxu0 0
        %1478 = vmatpush1.bf16.msra.mxu0 0
        %1479 = vmatprep.subr.bf16.mxu0 0
        %1480 = vmatpush1.bf16.msra.mxu0 0
        %1481 = vmatprep.subr.bf16.mxu0 0
        %1482 = vmatpush1.bf16.msra.mxu0 0
        %1483 = vmatprep.subr.bf16.mxu0 0
        %1484 = vmatpush1.bf16.msra.mxu0 0
        %1485 = vmatprep.subr.bf16.mxu0 0
        %1486 = vmatpush1.bf16.msra.mxu0 0
        %1487 = vmatprep.subr.bf16.mxu0 0
        %1488 = vmatpush1.bf16.msra.mxu0 0
        %1489 = vmatprep.subr.bf16.mxu0 0
        %1490 = vmatpush1.bf16.msra.mxu0 0
        %1491 = vmatprep.subr.bf16.mxu0 0
        %1492 = vmatpush1.bf16.msra.mxu0 0
        %1493 = vmatprep.subr.bf16.mxu0 0
        %1494 = vmatpush1.bf16.msra.mxu0 0
        %1495 = vmatprep.mubr.bf16.mxu0 0
        %1496 = vmatmul.mubr.bf16.gmra.mrb[0].mxu0 %v1461
        %v1497 = vpop.f32.mrb[0].mxu0
        %v1498 = vadd.f32 0.0, %v1497
        %v1499 = vpop.f32.mrb[0].mxu0
        %v1500 = vpop.f32.mrb[0].mxu0
        %v1501 = vpop.f32.mrb[0].mxu0
        %1502 = vdwg.mxu0
        %vm1503 = vcmp.gt.f32.partialorder %v1498, 0.5
        %v1508 = vunpack.c.l.b16 %v1352
        %v1509 = vunpack.c.l.b16 %v1353
        %v1510 = vunpack.c.l.b16 %v1354
        %v1511 = vunpack.c.l.b16 %v1355
        %v1512 = vpack.c.b16 %v1509, %v1508
        %v1513 = vpack.c.b16 %v1511, %v1510
        %1516 = vmatprep.subr.bf16.mxu0 0
        %1517 = vmatpush1.bf16.msra.mxu0 %v1512
        %1518 = vmatprep.subr.bf16.mxu0 0
        %1519 = vmatpush1.bf16.msra.mxu0 %v1513
        %1520 = vmatprep.subr.bf16.mxu0 0
        %1521 = vmatpush1.bf16.msra.mxu0 0
        %1522 = vmatprep.subr.bf16.mxu0 0
        %1523 = vmatpush1.bf16.msra.mxu0 0
        %1524 = vmatprep.subr.bf16.mxu0 0
        %1525 = vmatpush1.bf16.msra.mxu0 0
        %1526 = vmatprep.subr.bf16.mxu0 0
        %1527 = vmatpush1.bf16.msra.mxu0 0
        %1528 = vmatprep.subr.bf16.mxu0 0
        %1529 = vmatpush1.bf16.msra.mxu0 0
        %1530 = vmatprep.subr.bf16.mxu0 0
        %1531 = vmatpush1.bf16.msra.mxu0 0
        %1532 = vmatprep.subr.bf16.mxu0 0
        %1533 = vmatpush1.bf16.msra.mxu0 0
        %1534 = vmatprep.subr.bf16.mxu0 0
        %1535 = vmatpush1.bf16.msra.mxu0 0
        %1536 = vmatprep.subr.bf16.mxu0 0
        %1537 = vmatpush1.bf16.msra.mxu0 0
        %1538 = vmatprep.subr.bf16.mxu0 0
        %1539 = vmatpush1.bf16.msra.mxu0 0
        %1540 = vmatprep.subr.bf16.mxu0 0
        %1541 = vmatpush1.bf16.msra.mxu0 0
        %1542 = vmatprep.subr.bf16.mxu0 0
        %1543 = vmatpush1.bf16.msra.mxu0 0
        %1544 = vmatprep.subr.bf16.mxu0 0
        %1545 = vmatpush1.bf16.msra.mxu0 0
        %1546 = vmatprep.subr.bf16.mxu0 0
        %1547 = vmatpush1.bf16.msra.mxu0 0
        %1548 = vmatprep.mubr.bf16.mxu0 0
        %1549 = vmatmul.mubr.bf16.gmra.mrb[0].mxu0 %v1359
        %v1550 = vpop.f32.mrb[0].mxu0
        %v1551 = vadd.f32 %v1453, %v1550
        %v1552 = vpop.f32.mrb[0].mxu0
        %v1553 = vpop.f32.mrb[0].mxu0
        %v1554 = vpop.f32.mrb[0].mxu0
        %1555 = vdwg.mxu0
        %v1556 = vsel %vm1503, 1, 0
        %v1557 = vlaneseq
        %v1558 = vshrl.u32 %v1557, 7
        %v1559 = vsub.s32 0, %v1558
        %v1560 = vrot.slane %v1556, %v1559
        %vm1561 = vcmp.eq.s32.totalorder %v1560, 1
        %v1562 = vsel %vm1561, -1e+32, %v1551
        %vm1563 = vcmp.ge.s32.totalorder %v535, 1
        %vm1564 = vcmp.lt.s32.totalorder %v535, 21
        %vm1565 = vmand %vm1563, %vm1564
        %v1566 = vsel %vm1565, %v1562, -1e+24
        %1567 = vst [vmem:[%s297] sm:$0xff] %v1566
        %s1568 = sand.u32 %s191, 1
        %s1569 = scalar_lea.sflag [#allocation3], %s1568
        %s1570 = sand.u32 %s191, 1
        %s1571 = smul.addr %s1570, 8
        %s1572 = scalar_lea.vmem [#allocation2], %s1571
        // Predicated region
        $region49: #{fbart_decoder_forward.1} parent=47 // pred_check
          %p1573 = pneg %p201
        $region50: #{fbart_decoder_forward.1} parent=47 // pred_check_branch
          %1575 = sbr.rel (%p1573) target = $region52
        $region51: #{fbart_decoder_forward.1} parent=47 // pred_region
          %s1577 = ssub.s32 128, 128
          %1578 = vsyncadd %s1569, %s1577
          %s1579 = smul.addr %s21, 128
          %s1580 = scalar_lea.hbm %s7, %s1579
          %s1582 = sshll.u32 %s1572, 4
          %s1583 = int_to_ptr.vmem [resolvable:$true] %s1582
          %1585 = dma.vmem_to_hbm [thread:$0]  %s1583, 128, %s1580, %s1569
        $region52: #{fbart_decoder_forward.1} parent=47 // pred_fallthru
          _
      $region48: #{fbart_decoder_forward.1} parent=5 // pred_fallthru
        _
      %p1586 = scmp.le.s32.totalorder 2, %s16
      // Predicated region
      $region53: #{fbart_decoder_forward.1} parent=5 // pred_check
        %p1587 = pneg %p1586
      $region54: #{fbart_decoder_forward.1} parent=5 // pred_check_branch
        %1589 = sbr.rel (%p1587) target = $region56
      $region55: #{fbart_decoder_forward.1} parent=5 // pred_region
        %s1590 = ssub.s32 %s16, 2
        // Predicated region
        $region57: #{fbart_decoder_forward.1} parent=55 // pred_check
          %p1591 = pneg %p207
        $region58: #{fbart_decoder_forward.1} parent=55 // pred_check_branch
          %1593 = sbr.rel (%p1591) target = $region60
        $region59: #{fbart_decoder_forward.1} parent=55 // pred_region
          %s1594 = sand.u32 %s192, 1
          %s1595 = scalar_lea.sflag [#allocation3], %s1594
          %s1596 = sand.u32 %s192, 1
          %s1597 = smul.addr %s1596, 8
          %s1598 = scalar_lea.vmem [#allocation2], %s1597
          %1599 = dma.done %s1595, 128
        $region60: #{fbart_decoder_forward.1} parent=55 // pred_fallthru
          _
      $region56: #{fbart_decoder_forward.1} parent=5 // pred_fallthru
        _
    $region6: #{fbart_decoder_forward.1} parent=1 // loop_footer
      %s20 = sadd.s32 1, %s16
    $region7: #{fbart_decoder_forward.1} parent=1 // loop_footer_branch
      %15 = sbr.rel target = $region3
    $region8: #{fbart_decoder_forward.1} parent=1 // loop_exit
      _
    %1600 = vsyncpa [#allocation3], 1
    %s1601 = scalar_lea.sflag [#allocation3], 1
    %1602 = vsyncpa %s1601, 1

</llo_original>
